<compile_context>
chip_gen: v7x
topology: tpu7x:2x2x1
jax: 0.10.0
libtpu: 0.0.40
codegen_flags: <defaults>
</compile_context>

<pallas_src>
import functools

import jax
import jax.numpy as jnp
from jax.experimental import pallas as pl
from jax.experimental.pallas import tpu as pltpu


MAX_CHUNK = 16  # max timesteps per grid step (statically unrolled in-kernel)


# ----------------------------------------------------------------------------
# Small helpers
# ----------------------------------------------------------------------------
def _pick_chunk(T, max_chunk=MAX_CHUNK):
    """Largest divisor of T that is <= max_chunk (falls back to 1)."""
    c = min(T, max_chunk)
    while c > 1 and T % c != 0:
        c -= 1
    return max(c, 1)


def _pick_row_tile(n, max_tile=256):
    """Row tile for the gates GEMM (multiple of 8 that divides n, or n)."""
    if n <= max_tile:
        return n                      # block == full dim is always legal
    for t in (256, 128, 64, 32, 16, 8):
        if n % t == 0:
            return t
    return n


def _lstm_cell_ifog(gates, c_prev, hidden):
    """LSTM cell with gate columns pre-permuted to (i, f, o, g)."""
    s = jax.nn.sigmoid(gates[:, :3 * hidden])      # one wide EUP pass
    i = s[:, :hidden]
    f = s[:, hidden:2 * hidden]
    o = s[:, 2 * hidden:3 * hidden]
    g = jnp.tanh(gates[:, 3 * hidden:])
    c_new = f * c_prev + i * g
    h_new = o * jnp.tanh(c_new)
    return h_new, c_new


# ----------------------------------------------------------------------------
# Pallas kernels
# ----------------------------------------------------------------------------
def _gates_kernel(x_ref, w_ref, b_ref, g_ref):
    # x: (tm, in) f32, w: (in, D*4H) bf16, b: (1, D*4H) f32 -> (tm, D*4H) f32.
    g_ref[...] = (
        jnp.dot(x_ref[...].astype(jnp.bfloat16), w_ref[...],
                preferred_element_type=jnp.float32)
        + b_ref[...])


def _bilstm_kernel(gxf_ref, gxb_ref, whh_ref, outf_ref, outb_ref,
                   hN_ref, cN_ref, h_sc, cf_sc, cb_sc):
    """Fused bidirectional LSTM recurrence over one chunk of C timesteps.

    gxf_ref : (C, B, 4H) precomputed x-gates, forward chunk (ascending time)
    gxb_ref : (C, B, 4H) precomputed x-gates, backward chunk (chunk index is
              reversed in the BlockSpec; within-chunk reversal done here)
    whh_ref : (2H, 8H) bf16 block-diagonal recurrent weights [fwd | bwd]
    outf/outb: (C, B, H) per-step hidden outputs
    hN/cN   : (2, B, H) final states [fwd, bwd]
    h_sc    : (B, 2H) f32 scratch carrying [h_fwd | h_bwd] across grid steps
    cf/cb_sc: (B, H)  f32 scratch carrying the cell states
    """
    step = pl.program_id(0)
    C = gxf_ref.shape[0]
    G4 = gxf_ref.shape[-1]
    H = outf_ref.shape[-1]

    @pl.when(step == 0)
    def _():
        h_sc[...] = jnp.zeros_like(h_sc)
        cf_sc[...] = jnp.zeros_like(cf_sc)
        cb_sc[...] = jnp.zeros_like(cb_sc)

    whh = whh_ref[...]                      # (2H, 8H) bf16, VMEM resident
    h = h_sc[...]                           # (B, 2H) f32
    cf = cf_sc[...]
    cb = cb_sc[...]
    hf = h[:, :H]
    hb = h[:, H:]

    # Static unroll; C <= MAX_CHUNK keeps the live set within the vreg file.
    for i in range(C):
        # ONE merged recurrent matmul for both directions (block-diagonal W).
        ghh = jnp.dot(h.astype(jnp.bfloat16), whh,
                      preferred_element_type=jnp.float32)      # (B, 8H) f32
        g_f = gxf_ref[i] + ghh[:, :G4]
        g_b = gxb_ref[C - 1 - i] + ghh[:, G4:]
        hf, cf = _lstm_cell_ifog(g_f, cf, H)
        hb, cb = _lstm_cell_ifog(g_b, cb, H)
        h = jnp.concatenate([hf, hb], axis=-1)
        outf_ref[i] = hf
        outb_ref[C - 1 - i] = hb

    h_sc[...] = h
    cf_sc[...] = cf
    cb_sc[...] = cb

    @pl.when(step == pl.num_programs(0) - 1)
    def _():
        hN_ref[0] = hf
        hN_ref[1] = hb
        cN_ref[0] = cf
        cN_ref[1] = cb


def _unilstm_kernel(gx_ref, whh_ref, out_ref, hN_ref, cN_ref, h_sc, c_sc):
    step = pl.program_id(0)
    C = gx_ref.shape[0]
    H = out_ref.shape[-1]

    @pl.when(step == 0)
    def _():
        h_sc[...] = jnp.zeros_like(h_sc)
        c_sc[...] = jnp.zeros_like(c_sc)

    whh = whh_ref[...]                      # (H, 4H) bf16
    h = h_sc[...]
    c = c_sc[...]
    for i in range(C):
        g = gx_ref[i] + jnp.dot(h.astype(jnp.bfloat16), whh,
                                preferred_element_type=jnp.float32)
        h, c = _lstm_cell_ifog(g, c, H)
        out_ref[i] = h
    h_sc[...] = h
    c_sc[...] = c

    @pl.when(step == pl.num_programs(0) - 1)
    def _():
        hN_ref[0] = h
        cN_ref[0] = c


# ----------------------------------------------------------------------------
# Wrappers
# ----------------------------------------------------------------------------
def gates_precompute(x_tbe, w_in_t, b_in):
    """One big bf16 GEMM for all timesteps / directions.

    x_tbe  : (T, B, in) time-major layer input (f32)
    w_in_t : (in, D*4H) bf16, pre-transposed (layer 0: embedding folded in)
    b_in   : (1, D*4H) f32 combined bias
    returns: (T, B, D*4H) f32 gate pre-activations, lane-dense.
    """
    T, B, E = x_tbe.shape
    D4H = w_in_t.shape[-1]
    N = T * B
    x2d = x_tbe.reshape(N, E)
    tm = _pick_row_tile(N)
    grid = (N // tm,)

    g = pl.pallas_call(
        _gates_kernel,
        grid=grid,
        in_specs=[
            pl.BlockSpec((tm, E), lambda i: (i, 0)),
            pl.BlockSpec((E, D4H), lambda i: (0, 0)),
            pl.BlockSpec((1, D4H), lambda i: (0, 0)),
        ],
        out_specs=pl.BlockSpec((tm, D4H), lambda i: (i, 0)),
        out_shape=jax.ShapeDtypeStruct((N, D4H), jnp.float32),
        compiler_params=pltpu.CompilerParams(
            dimension_semantics=("parallel",)),
    )(x2d, w_in_t, b_in)
    return g.reshape(T, B, D4H)


def bilstm_recurrence(gates, whh_bd, hidden):
    """Fused bidirectional recurrence; time reversal + direction selection are
    expressed purely in the BlockSpec index_maps on the single gates array."""
    T, B, G8 = gates.shape
    H = hidden
    G4 = 4 * H
    C = _pick_chunk(T)
    n_chunks = T // C

    if G4 % 128 == 0:
        # Direction chosen by the last-axis BLOCK index (no lane split).
        a_f, a_b = gates, gates
        f_spec = pl.BlockSpec((C, B, G4), lambda c: (c, 0, 0))
        b_spec = pl.BlockSpec((C, B, G4), lambda c: (n_chunks - 1 - c, 0, 1))
    else:
        # Fallback for awkward H: split once in XLA, full-last-dim blocks.
        a_f, a_b = gates[..., :G4], gates[..., G4:]
        f_spec = pl.BlockSpec((C, B, G4), lambda c: (c, 0, 0))
        b_spec = pl.BlockSpec((C, B, G4), lambda c: (n_chunks - 1 - c, 0, 0))

    outf, outb, hN, cN = pl.pallas_call(
        _bilstm_kernel,
        grid=(n_chunks,),
        in_specs=[
            f_spec,
            b_spec,
            pl.BlockSpec((2 * H, 8 * H), lambda c: (0, 0)),
        ],
        out_specs=[
            pl.BlockSpec((C, B, H), lambda c: (c, 0, 0)),
            pl.BlockSpec((C, B, H), lambda c: (n_chunks - 1 - c, 0, 0)),
            pl.BlockSpec((2, B, H), lambda c: (0, 0, 0)),
            pl.BlockSpec((2, B, H), lambda c: (0, 0, 0)),
        ],
        out_shape=[
            jax.ShapeDtypeStruct((T, B, H), jnp.float32),
            jax.ShapeDtypeStruct((T, B, H), jnp.float32),
            jax.ShapeDtypeStruct((2, B, H), jnp.float32),
            jax.ShapeDtypeStruct((2, B, H), jnp.float32),
        ],
        scratch_shapes=[pltpu.VMEM((B, 2 * H), jnp.float32),
                        pltpu.VMEM((B, H), jnp.float32),
                        pltpu.VMEM((B, H), jnp.float32)],
        compiler_params=pltpu.CompilerParams(
            dimension_semantics=("arbitrary",)),
    )(a_f, a_b, whh_bd)
    return outf, outb, hN, cN


def unilstm_recurrence(gates, whh_t, hidden):
    T, B, G4 = gates.shape
    H = hidden
    C = _pick_chunk(T)
    n_chunks = T // C

    out, hN, cN = pl.pallas_call(
        _unilstm_kernel,
        grid=(n_chunks,),
        in_specs=[
            pl.BlockSpec((C, B, G4), lambda c: (c, 0, 0)),
            pl.BlockSpec((H, G4), lambda c: (0, 0)),
        ],
        out_specs=[
            pl.BlockSpec((C, B, H), lambda c: (c, 0, 0)),
            pl.BlockSpec((1, B, H), lambda c: (0, 0, 0)),
            pl.BlockSpec((1, B, H), lambda c: (0, 0, 0)),
        ],
        out_shape=[
            jax.ShapeDtypeStruct((T, B, H), jnp.float32),
            jax.ShapeDtypeStruct((1, B, H), jnp.float32),
            jax.ShapeDtypeStruct((1, B, H), jnp.float32),
        ],
        scratch_shapes=[pltpu.VMEM((B, H), jnp.float32),
                        pltpu.VMEM((B, H), jnp.float32)],
        compiler_params=pltpu.CompilerParams(
            dimension_semantics=("arbitrary",)),
    )(gates, whh_t)
    return out, hN, cN


def encoder_forward(task_sequence, prep, *, num_dir, hidden):
    """Full Encoder forward (Linear embedding + (bi)LSTM, batch_first).

    task_sequence : (B, T, input_feature)
    prep          : output of prepare_params()
    returns       : output (B, T, num_dir*H), (h, c) each (L*num_dir, B, H)
    """
    layers = prep["layers"]

    # Single small transpose to time-major; everything downstream stays
    # time-major (no per-layer transposes).
    x = jnp.transpose(task_sequence, (1, 0, 2))              # (T, B, F)

    h_list, c_list = [], []
    for lp in layers:
        gates = gates_precompute(x, lp["w_in_t"], lp["b_in"])  # (T, B, D*4H)
        if num_dir == 2:
            outf, outb, hN, cN = bilstm_recurrence(gates, lp["whh"], hidden)
            x = jnp.concatenate([outf, outb], axis=-1)          # (T, B, 2H)
        else:
            x, hN, cN = unilstm_recurrence(gates, lp["whh"], hidden)
        h_list.append(hN)
        c_list.append(cN)

    output = jnp.transpose(x, (1, 0, 2))                      # (B, T, D*H)
    h = jnp.concatenate(h_list, axis=0)                       # (L*D, B, H)
    c = jnp.concatenate(c_list, axis=0)
    return output, (h, c)


# ----------------------------------------------------------------------------
# Parameter preparation (done ONCE, outside the hot path)
# ----------------------------------------------------------------------------
def _to_ifog(w):
    """Permute PyTorch (i,f,g,o) gate blocks (axis 0) to (i,f,o,g)."""
    H = w.shape[0] // 4
    return jnp.concatenate([w[:2 * H], w[3 * H:], w[2 * H:3 * H]], axis=0)


def prepare_params(params):
    """Pre-transpose / pre-combine weights (bf16), fold embedding, permute
    gates to (i,f,o,g) and build the block-diagonal recurrent matrix."""
    num_layers = params["num_layers"]
    num_dir = 2 if params["bidirectional"] else 1
    w_emb, b_emb = params["w_emb"], params["b_emb"]        # (E, F), (E,)

    layers = []
    for l in range(num_layers):
        wih_list, whh_list, b_list = [], [], []
        for d in range(num_dir):
            w_ih, w_hh, b_ih, b_hh = params["lstm"][(l, d)]
            wih_list.append(_to_ifog(w_ih))                # (4H, in)
            whh_list.append(_to_ifog(w_hh))                # (4H, H)
            b_list.append(_to_ifog(b_ih + b_hh))
        H = whh_list[0].shape[1]
        w_ih_cat = jnp.concatenate(wih_list, axis=0)       # (D*4H, in)
        b_cat = jnp.concatenate(b_list, axis=0)            # (D*4H,)
        if l == 0:
            # Fold embedding: x @ (W_ih @ W_emb)^T + (W_ih @ b_emb + b)
            w_in = w_ih_cat @ w_emb                        # (D*4H, F)
            b_in = w_ih_cat @ b_emb + b_cat
        else:
            w_in = w_ih_cat
            b_in = b_cat

        if num_dir == 2:
            # Block-diagonal (2H, 8H): [h_f | h_b] @ W -> [gates_f | gates_b]
            whh_bd = jnp.zeros((2 * H, 8 * H), jnp.float32)
            whh_bd = whh_bd.at[:H, :4 * H].set(whh_list[0].T)
            whh_bd = whh_bd.at[H:, 4 * H:].set(whh_list[1].T)
            whh_prep = whh_bd.astype(jnp.bfloat16)
        else:
            whh_prep = whh_list[0].T.astype(jnp.bfloat16)  # (H, 4H)

        layers.append({
            "w_in_t": jnp.asarray(w_in.T).astype(jnp.bfloat16),  # (in, D*4H)
            "b_in": b_in.reshape(1, -1).astype(jnp.float32),     # (1, D*4H)
            "whh": whh_prep,
        })
    return {"layers": layers}


# ----------------------------------------------------------------------------
# Parameter init (deterministic, PyTorch-style uniform ranges)
# ----------------------------------------------------------------------------
def init_params(key, input_feature, embedding_dim, hidden, num_layers,
                bidirectional):
    num_dir = 2 if bidirectional else 1
    params = {"num_layers": num_layers, "bidirectional": bidirectional}

    k_emb = 1.0 / jnp.sqrt(input_feature)
    key, k1, k2 = jax.random.split(key, 3)
    params["w_emb"] = jax.random.uniform(
        k1, (embedding_dim, input_feature), jnp.float32, -k_emb, k_emb)
    params["b_emb"] = jax.random.uniform(
        k2, (embedding_dim,), jnp.float32, -k_emb, k_emb)

    k_lstm = 1.0 / jnp.sqrt(hidden)
    lstm = {}
    for l in range(num_layers):
        in_sz = embedding_dim if l == 0 else num_dir * hidden
        for d in range(num_dir):
            key, a, b, cc, dd = jax.random.split(key, 5)
            lstm[(l, d)] = (
                jax.random.uniform(a, (4 * hidden, in_sz), jnp.float32,
                                   -k_lstm, k_lstm),
                jax.random.uniform(b, (4 * hidden, hidden), jnp.float32,
                                   -k_lstm, k_lstm),
                jax.random.uniform(cc, (4 * hidden,), jnp.float32,
                                   -k_lstm, k_lstm),
                jax.random.uniform(dd, (4 * hidden,), jnp.float32,
                                   -k_lstm, k_lstm),
            )
    params["lstm"] = lstm
    return params


# ----------------------------------------------------------------------------
# Pure-JAX reference (PyTorch semantics, f32) for correctness check
# ----------------------------------------------------------------------------
def encoder_reference(task_sequence, params):
    emb = task_sequence @ params["w_emb"].T + params["b_emb"]
    x_tbe = jnp.transpose(emb, (1, 0, 2))
    num_dir = 2 if params["bidirectional"] else 1

    def run_dir(x, wih, whh, bih, bhh):
        H = whh.shape[1]
        B = x.shape[1]

        def step(carry, x_t):
            h, c = carry
            gates = x_t @ wih.T + bih + h @ whh.T + bhh
            i = jax.nn.sigmoid(gates[:, 0:H])
            f = jax.nn.sigmoid(gates[:, H:2 * H])
            g = jnp.tanh(gates[:, 2 * H:3 * H])
            o = jax.nn.sigmoid(gates[:, 3 * H:4 * H])
            c_n = f * c + i * g
            h_n = o * jnp.tanh(c_n)
            return (h_n, c_n), h_n

        init = (jnp.zeros((B, H)), jnp.zeros((B, H)))
        (hN, cN), outs = jax.lax.scan(step, init, x)
        return outs, hN, cN

    h_list, c_list = [], []
    layer_in = x_tbe
    for l in range(params["num_layers"]):
        dir_outs = []
        for d in range(num_dir):
            wih, whh, bih, bhh = params["lstm"][(l, d)]
            x_dir = layer_in[::-1] if d == 1 else layer_in
            out, hN, cN = run_dir(x_dir, wih, whh, bih, bhh)
            if d == 1:
                out = out[::-1]
            dir_outs.append(out)
            h_list.append(hN)
            c_list.append(cN)
        layer_in = jnp.concatenate(dir_outs, axis=-1)
    return (jnp.transpose(layer_in, (1, 0, 2)),
            (jnp.stack(h_list), jnp.stack(c_list)))


# ----------------------------------------------------------------------------
if __name__ == "__main__":
    # Small shapes consistent with the module's forward
    B, T = 2, 8
    INPUT_FEATURE = 16
    EMBEDDING_DIM = 32
    HIDDEN = 32
    NUM_LAYERS = 1
    BIDIRECTIONAL = True

    key = jax.random.PRNGKey(0)
    key, kx, kp = jax.random.split(key, 3)
    task_sequence = jax.random.normal(kx, (B, T, INPUT_FEATURE), jnp.float32)
    params = init_params(kp, INPUT_FEATURE, EMBEDDING_DIM, HIDDEN,
                         NUM_LAYERS, BIDIRECTIONAL)
    prep = prepare_params(params)             # one-time weight prep (bf16 etc.)
    num_dir = 2 if BIDIRECTIONAL else 1

    fwd = jax.jit(functools.partial(encoder_forward,
                                    num_dir=num_dir, hidden=HIDDEN))
    output, (h, c) = fwd(task_sequence, prep)
    jax.block_until_ready((output, h, c))

    # Sanity-check against pure-f32 reference (bf16 MXU inputs -> looser tol,
    # still far below any structural-bug error magnitude).
    ref_out, (ref_h, ref_c) = encoder_reference(task_sequence, params)
    assert output.shape == (B, T, num_dir * HIDDEN)
    assert h.shape == (NUM_LAYERS * num_dir, B, HIDDEN)
    assert c.shape == (NUM_LAYERS * num_dir, B, HIDDEN)
    assert jnp.allclose(output, ref_out, atol=5e-2, rtol=5e-2)
    assert jnp.allclose(h, ref_h, atol=5e-2, rtol=5e-2)
    assert jnp.allclose(c, ref_c, atol=5e-2, rtol=5e-2)

    print("KERNEL_OK")
</pallas_src>

<mosaic_0001>
module attributes {stable_mosaic.version = 11 : i64} {
  func.func @_gates_kernel(%arg0: i32, %arg1: memref<16x16xf32, #tpu.memory_space<vmem>>, %arg2: memref<16x256xbf16, #tpu.memory_space<vmem>>, %arg3: memref<1x256xf32, #tpu.memory_space<vmem>>, %arg4: memref<16x256xf32, #tpu.memory_space<vmem>>) attributes {dimension_semantics = [#tpu.dimension_semantics<parallel>], iteration_bounds = array<i64: 1>, scalar_prefetch = 0 : i64, scratch_operands = 0 : i64, tpu.core_type = #tpu.core_type<tc>, window_params = [{transform_indices = @transform_0, window_bounds = array<i64: 16, 16>}, {pipeline_mode = #tpu.pipeline_mode<synchronous>, transform_indices = @transform_1, window_bounds = array<i64: 16, 256>}, {pipeline_mode = #tpu.pipeline_mode<synchronous>, transform_indices = @transform_2, window_bounds = array<i64: 1, 256>}, {transform_indices = @transform_3, window_bounds = array<i64: 16, 256>}]} {
    %c0 = arith.constant 0 : index
    %c0_0 = arith.constant 0 : index
    %0 = vector.load %arg1[%c0, %c0_0] : memref<16x16xf32, #tpu.memory_space<vmem>>, vector<16x16xf32>
    %1 = arith.truncf %0 : vector<16x16xf32> to vector<16x16xbf16>
    %c0_1 = arith.constant 0 : index
    %c0_2 = arith.constant 0 : index
    %2 = vector.load %arg2[%c0_1, %c0_2] : memref<16x256xbf16, #tpu.memory_space<vmem>>, vector<16x256xbf16>
    %cst = arith.constant dense<0.000000e+00> : vector<16x256xf32>
    %3 = tpu.matmul %1, %2, %cst {dimension_numbers = #tpu.dot_dimension_numbers<[1], [0], [0], [1], [0, 0, 1, 1], [], []>} : vector<16x16xbf16>, vector<16x256xbf16>, vector<16x256xf32> -> vector<16x256xf32>
    %c0_3 = arith.constant 0 : index
    %c0_4 = arith.constant 0 : index
    %4 = vector.load %arg3[%c0_3, %c0_4] : memref<1x256xf32, #tpu.memory_space<vmem>>, vector<1x256xf32>
    %5 = vector.broadcast %4 : vector<1x256xf32> to vector<16x256xf32>
    %6 = arith.addf %3, %5 : vector<16x256xf32>
    %c0_5 = arith.constant 0 : index
    %c0_6 = arith.constant 0 : index
    %7 = vector.load %arg4[%c0_5, %c0_6] : memref<16x256xf32, #tpu.memory_space<vmem>>, vector<16x256xf32>
    tpu.vector_store %arg4[%c0_5, %c0_6], %6 {strides = array<i32>} : memref<16x256xf32, #tpu.memory_space<vmem>>, vector<16x256xf32>,
    return
  }
  func.func @transform_0(%arg0: i32) -> (i32, i32) {
    %c0_i32 = arith.constant 0 : i32
    %c0_i32_0 = arith.constant 0 : i32
    return %arg0, %c0_i32 : i32, i32
  }
  func.func @transform_1(%arg0: i32) -> (i32, i32) {
    %c0_i32 = arith.constant 0 : i32
    %c0_i32_0 = arith.constant 0 : i32
    %c0_i32_1 = arith.constant 0 : i32
    return %c0_i32, %c0_i32_0 : i32, i32
  }
  func.func @transform_2(%arg0: i32) -> (i32, i32) {
    %c0_i32 = arith.constant 0 : i32
    %c0_i32_0 = arith.constant 0 : i32
    %c0_i32_1 = arith.constant 0 : i32
    return %c0_i32, %c0_i32_0 : i32, i32
  }
  func.func @transform_3(%arg0: i32) -> (i32, i32) {
    %c0_i32 = arith.constant 0 : i32
    %c0_i32_0 = arith.constant 0 : i32
    return %arg0, %c0_i32 : i32, i32
  }
}

module attributes {stable_mosaic.version = 11 : i64} {
  func.func @_bilstm_kernel(%arg0: i32, %arg1: memref<8x2x128xf32, #tpu.memory_space<vmem>>, %arg2: memref<8x2x128xf32, #tpu.memory_space<vmem>>, %arg3: memref<64x256xbf16, #tpu.memory_space<vmem>>, %arg4: memref<8x2x32xf32, #tpu.memory_space<vmem>>, %arg5: memref<8x2x32xf32, #tpu.memory_space<vmem>>, %arg6: memref<2x2x32xf32, #tpu.memory_space<vmem>>, %arg7: memref<2x2x32xf32, #tpu.memory_space<vmem>>, %arg8: memref<2x64xf32, #tpu.memory_space<vmem>>, %arg9: memref<2x32xf32, #tpu.memory_space<vmem>>, %arg10: memref<2x32xf32, #tpu.memory_space<vmem>>) attributes {dimension_semantics = [#tpu.dimension_semantics<arbitrary>], iteration_bounds = array<i64: 1>, scalar_prefetch = 0 : i64, scratch_operands = 3 : i64, tpu.core_type = #tpu.core_type<tc>, window_params = [{transform_indices = @transform_0, window_bounds = array<i64: 8, 2, 128>}, {transform_indices = @transform_1, window_bounds = array<i64: 8, 2, 128>}, {pipeline_mode = #tpu.pipeline_mode<synchronous>, transform_indices = @transform_2, window_bounds = array<i64: 64, 256>}, {transform_indices = @transform_3, window_bounds = array<i64: 8, 2, 32>}, {transform_indices = @transform_4, window_bounds = array<i64: 8, 2, 32>}, {pipeline_mode = #tpu.pipeline_mode<synchronous>, transform_indices = @transform_5, window_bounds = array<i64: 2, 2, 32>}, {pipeline_mode = #tpu.pipeline_mode<synchronous>, transform_indices = @transform_6, window_bounds = array<i64: 2, 2, 32>}]} {
    %c0_i32 = arith.constant 0 : i32
    %0 = arith.cmpi eq, %arg0, %c0_i32 : i32
    %1 = arith.extui %0 : i1 to i32
    %c0_i32_0 = arith.constant 0 : i32
    %2 = arith.cmpi ne, %1, %c0_i32_0 : i32
    scf.if %2 {
      %cst_128 = arith.constant 0.000000e+00 : f32
      %405 = vector.broadcast %cst_128 : f32 to vector<2x64xf32>
      %c0_129 = arith.constant 0 : index
      %c0_130 = arith.constant 0 : index
      %406 = vector.load %arg8[%c0_129, %c0_130] : memref<2x64xf32, #tpu.memory_space<vmem>>, vector<2x64xf32>
      tpu.vector_store %arg8[%c0_129, %c0_130], %405 {strides = array<i32>} : memref<2x64xf32, #tpu.memory_space<vmem>>, vector<2x64xf32>,
      %cst_131 = arith.constant 0.000000e+00 : f32
      %407 = vector.broadcast %cst_131 : f32 to vector<2x32xf32>
      %c0_132 = arith.constant 0 : index
      %c0_133 = arith.constant 0 : index
      %408 = vector.load %arg9[%c0_132, %c0_133] : memref<2x32xf32, #tpu.memory_space<vmem>>, vector<2x32xf32>
      tpu.vector_store %arg9[%c0_132, %c0_133], %407 {strides = array<i32>} : memref<2x32xf32, #tpu.memory_space<vmem>>, vector<2x32xf32>,
      %cst_134 = arith.constant 0.000000e+00 : f32
      %409 = vector.broadcast %cst_134 : f32 to vector<2x32xf32>
      %c0_135 = arith.constant 0 : index
      %c0_136 = arith.constant 0 : index
      %410 = vector.load %arg10[%c0_135, %c0_136] : memref<2x32xf32, #tpu.memory_space<vmem>>, vector<2x32xf32>
      tpu.vector_store %arg10[%c0_135, %c0_136], %409 {strides = array<i32>} : memref<2x32xf32, #tpu.memory_space<vmem>>, vector<2x32xf32>,
    } else {
    }
    %c0 = arith.constant 0 : index
    %c0_1 = arith.constant 0 : index
    %3 = vector.load %arg3[%c0, %c0_1] : memref<64x256xbf16, #tpu.memory_space<vmem>>, vector<64x256xbf16>
    %c0_2 = arith.constant 0 : index
    %c0_3 = arith.constant 0 : index
    %4 = vector.load %arg8[%c0_2, %c0_3] : memref<2x64xf32, #tpu.memory_space<vmem>>, vector<2x64xf32>
    %c0_4 = arith.constant 0 : index
    %c0_5 = arith.constant 0 : index
    %5 = vector.load %arg9[%c0_4, %c0_5] : memref<2x32xf32, #tpu.memory_space<vmem>>, vector<2x32xf32>
    %c0_6 = arith.constant 0 : index
    %c0_7 = arith.constant 0 : index
    %6 = vector.load %arg10[%c0_6, %c0_7] : memref<2x32xf32, #tpu.memory_space<vmem>>, vector<2x32xf32>
    %7 = arith.truncf %4 : vector<2x64xf32> to vector<2x64xbf16>
    %cst = arith.constant dense<0.000000e+00> : vector<2x256xf32>
    %8 = tpu.matmul %7, %3, %cst {dimension_numbers = #tpu.dot_dimension_numbers<[1], [0], [0], [1], [0, 0, 1, 1], [], []>} : vector<2x64xbf16>, vector<64x256xbf16>, vector<2x256xf32> -> vector<2x256xf32>
    %c0_8 = arith.constant 0 : index
    %c0_9 = arith.constant 0 : index
    %c0_10 = arith.constant 0 : index
    %9 = vector.load %arg1[%c0_8, %c0_9, %c0_10] : memref<8x2x128xf32, #tpu.memory_space<vmem>>, vector<1x2x128xf32>
    %10 = vector.shape_cast %9 : vector<1x2x128xf32> to vector<2x128xf32>
    %11 = vector.extract_strided_slice %8 {offsets = [0, 0], sizes = [2, 128], strides = [1, 1]} : vector<2x256xf32> to vector<2x128xf32>
    %12 = arith.addf %10, %11 : vector<2x128xf32>
    %c7 = arith.constant 7 : index
    %c0_11 = arith.constant 0 : index
    %c0_12 = arith.constant 0 : index
    %13 = vector.load %arg2[%c7, %c0_11, %c0_12] : memref<8x2x128xf32, #tpu.memory_space<vmem>>, vector<1x2x128xf32>
    %14 = vector.shape_cast %13 : vector<1x2x128xf32> to vector<2x128xf32>
    %15 = vector.extract_strided_slice %8 {offsets = [0, 128], sizes = [2, 128], strides = [1, 1]} : vector<2x256xf32> to vector<2x128xf32>
    %16 = arith.addf %14, %15 : vector<2x128xf32>
    %17 = vector.extract_strided_slice %12 {offsets = [0, 0], sizes = [2, 96], strides = [1, 1]} : vector<2x128xf32> to vector<2x96xf32>
    %18 = arith.negf %17 : vector<2x96xf32>
    %19 = math.exp %18 : vector<2x96xf32>
    %cst_13 = arith.constant 1.000000e+00 : f32
    %20 = vector.broadcast %cst_13 : f32 to vector<2x96xf32>
    %21 = arith.addf %20, %19 : vector<2x96xf32>
    %22 = arith.divf %20, %21 : vector<2x96xf32>
    %23 = vector.extract_strided_slice %22 {offsets = [0, 0], sizes = [2, 32], strides = [1, 1]} : vector<2x96xf32> to vector<2x32xf32>
    %24 = vector.extract_strided_slice %22 {offsets = [0, 32], sizes = [2, 32], strides = [1, 1]} : vector<2x96xf32> to vector<2x32xf32>
    %25 = vector.extract_strided_slice %22 {offsets = [0, 64], sizes = [2, 32], strides = [1, 1]} : vector<2x96xf32> to vector<2x32xf32>
    %26 = vector.extract_strided_slice %12 {offsets = [0, 96], sizes = [2, 32], strides = [1, 1]} : vector<2x128xf32> to vector<2x32xf32>
    %27 = math.tanh %26 : vector<2x32xf32>
    %28 = arith.mulf %24, %5 : vector<2x32xf32>
    %29 = arith.mulf %23, %27 : vector<2x32xf32>
    %30 = arith.addf %28, %29 : vector<2x32xf32>
    %31 = math.tanh %30 : vector<2x32xf32>
    %32 = arith.mulf %25, %31 : vector<2x32xf32>
    %33 = vector.extract_strided_slice %16 {offsets = [0, 0], sizes = [2, 96], strides = [1, 1]} : vector<2x128xf32> to vector<2x96xf32>
    %34 = arith.negf %33 : vector<2x96xf32>
    %35 = math.exp %34 : vector<2x96xf32>
    %cst_14 = arith.constant 1.000000e+00 : f32
    %36 = vector.broadcast %cst_14 : f32 to vector<2x96xf32>
    %37 = arith.addf %36, %35 : vector<2x96xf32>
    %38 = arith.divf %36, %37 : vector<2x96xf32>
    %39 = vector.extract_strided_slice %38 {offsets = [0, 0], sizes = [2, 32], strides = [1, 1]} : vector<2x96xf32> to vector<2x32xf32>
    %40 = vector.extract_strided_slice %38 {offsets = [0, 32], sizes = [2, 32], strides = [1, 1]} : vector<2x96xf32> to vector<2x32xf32>
    %41 = vector.extract_strided_slice %38 {offsets = [0, 64], sizes = [2, 32], strides = [1, 1]} : vector<2x96xf32> to vector<2x32xf32>
    %42 = vector.extract_strided_slice %16 {offsets = [0, 96], sizes = [2, 32], strides = [1, 1]} : vector<2x128xf32> to vector<2x32xf32>
    %43 = math.tanh %42 : vector<2x32xf32>
    %44 = arith.mulf %40, %6 : vector<2x32xf32>
    %45 = arith.mulf %39, %43 : vector<2x32xf32>
    %46 = arith.addf %44, %45 : vector<2x32xf32>
    %47 = math.tanh %46 : vector<2x32xf32>
    %48 = arith.mulf %41, %47 : vector<2x32xf32>
    %49 = tpu.concatenate %32, %48 in 1 : vector<2x32xf32>, vector<2x32xf32> -> vector<2x64xf32>
    %c0_15 = arith.constant 0 : index
    %c0_16 = arith.constant 0 : index
    %c0_17 = arith.constant 0 : index
    %50 = vector.load %arg4[%c0_15, %c0_16, %c0_17] : memref<8x2x32xf32, #tpu.memory_space<vmem>>, vector<1x2x32xf32>
    %51 = vector.shape_cast %50 : vector<1x2x32xf32> to vector<2x32xf32>
    %52 = vector.shape_cast %32 : vector<2x32xf32> to vector<1x2x32xf32>
    tpu.vector_store %arg4[%c0_15, %c0_16, %c0_17], %52 {strides = array<i32>} : memref<8x2x32xf32, #tpu.memory_space<vmem>>, vector<1x2x32xf32>,
    %c7_18 = arith.constant 7 : index
    %c0_19 = arith.constant 0 : index
    %c0_20 = arith.constant 0 : index
    %53 = vector.load %arg5[%c7_18, %c0_19, %c0_20] : memref<8x2x32xf32, #tpu.memory_space<vmem>>, vector<1x2x32xf32>
    %54 = vector.shape_cast %53 : vector<1x2x32xf32> to vector<2x32xf32>
    %55 = vector.shape_cast %48 : vector<2x32xf32> to vector<1x2x32xf32>
    tpu.vector_store %arg5[%c7_18, %c0_19, %c0_20], %55 {strides = array<i32>} : memref<8x2x32xf32, #tpu.memory_space<vmem>>, vector<1x2x32xf32>,
    %56 = arith.truncf %49 : vector<2x64xf32> to vector<2x64xbf16>
    %cst_21 = arith.constant dense<0.000000e+00> : vector<2x256xf32>
    %57 = tpu.matmul %56, %3, %cst_21 {dimension_numbers = #tpu.dot_dimension_numbers<[1], [0], [0], [1], [0, 0, 1, 1], [], []>} : vector<2x64xbf16>, vector<64x256xbf16>, vector<2x256xf32> -> vector<2x256xf32>
    %c1 = arith.constant 1 : index
    %c0_22 = arith.constant 0 : index
    %c0_23 = arith.constant 0 : index
    %58 = vector.load %arg1[%c1, %c0_22, %c0_23] : memref<8x2x128xf32, #tpu.memory_space<vmem>>, vector<1x2x128xf32>
    %59 = vector.shape_cast %58 : vector<1x2x128xf32> to vector<2x128xf32>
    %60 = vector.extract_strided_slice %57 {offsets = [0, 0], sizes = [2, 128], strides = [1, 1]} : vector<2x256xf32> to vector<2x128xf32>
    %61 = arith.addf %59, %60 : vector<2x128xf32>
    %c6 = arith.constant 6 : index
    %c0_24 = arith.constant 0 : index
    %c0_25 = arith.constant 0 : index
    %62 = vector.load %arg2[%c6, %c0_24, %c0_25] : memref<8x2x128xf32, #tpu.memory_space<vmem>>, vector<1x2x128xf32>
    %63 = vector.shape_cast %62 : vector<1x2x128xf32> to vector<2x128xf32>
    %64 = vector.extract_strided_slice %57 {offsets = [0, 128], sizes = [2, 128], strides = [1, 1]} : vector<2x256xf32> to vector<2x128xf32>
    %65 = arith.addf %63, %64 : vector<2x128xf32>
    %66 = vector.extract_strided_slice %61 {offsets = [0, 0], sizes = [2, 96], strides = [1, 1]} : vector<2x128xf32> to vector<2x96xf32>
    %67 = arith.negf %66 : vector<2x96xf32>
    %68 = math.exp %67 : vector<2x96xf32>
    %cst_26 = arith.constant 1.000000e+00 : f32
    %69 = vector.broadcast %cst_26 : f32 to vector<2x96xf32>
    %70 = arith.addf %69, %68 : vector<2x96xf32>
    %71 = arith.divf %69, %70 : vector<2x96xf32>
    %72 = vector.extract_strided_slice %71 {offsets = [0, 0], sizes = [2, 32], strides = [1, 1]} : vector<2x96xf32> to vector<2x32xf32>
    %73 = vector.extract_strided_slice %71 {offsets = [0, 32], sizes = [2, 32], strides = [1, 1]} : vector<2x96xf32> to vector<2x32xf32>
    %74 = vector.extract_strided_slice %71 {offsets = [0, 64], sizes = [2, 32], strides = [1, 1]} : vector<2x96xf32> to vector<2x32xf32>
    %75 = vector.extract_strided_slice %61 {offsets = [0, 96], sizes = [2, 32], strides = [1, 1]} : vector<2x128xf32> to vector<2x32xf32>
    %76 = math.tanh %75 : vector<2x32xf32>
    %77 = arith.mulf %73, %30 : vector<2x32xf32>
    %78 = arith.mulf %72, %76 : vector<2x32xf32>
    %79 = arith.addf %77, %78 : vector<2x32xf32>
    %80 = math.tanh %79 : vector<2x32xf32>
    %81 = arith.mulf %74, %80 : vector<2x32xf32>
    %82 = vector.extract_strided_slice %65 {offsets = [0, 0], sizes = [2, 96], strides = [1, 1]} : vector<2x128xf32> to vector<2x96xf32>
    %83 = arith.negf %82 : vector<2x96xf32>
    %84 = math.exp %83 : vector<2x96xf32>
    %cst_27 = arith.constant 1.000000e+00 : f32
    %85 = vector.broadcast %cst_27 : f32 to vector<2x96xf32>
    %86 = arith.addf %85, %84 : vector<2x96xf32>
    %87 = arith.divf %85, %86 : vector<2x96xf32>
    %88 = vector.extract_strided_slice %87 {offsets = [0, 0], sizes = [2, 32], strides = [1, 1]} : vector<2x96xf32> to vector<2x32xf32>
    %89 = vector.extract_strided_slice %87 {offsets = [0, 32], sizes = [2, 32], strides = [1, 1]} : vector<2x96xf32> to vector<2x32xf32>
    %90 = vector.extract_strided_slice %87 {offsets = [0, 64], sizes = [2, 32], strides = [1, 1]} : vector<2x96xf32> to vector<2x32xf32>
    %91 = vector.extract_strided_slice %65 {offsets = [0, 96], sizes = [2, 32], strides = [1, 1]} : vector<2x128xf32> to vector<2x32xf32>
    %92 = math.tanh %91 : vector<2x32xf32>
    %93 = arith.mulf %89, %46 : vector<2x32xf32>
    %94 = arith.mulf %88, %92 : vector<2x32xf32>
    %95 = arith.addf %93, %94 : vector<2x32xf32>
    %96 = math.tanh %95 : vector<2x32xf32>
    %97 = arith.mulf %90, %96 : vector<2x32xf32>
    %98 = tpu.concatenate %81, %97 in 1 : vector<2x32xf32>, vector<2x32xf32> -> vector<2x64xf32>
    %c1_28 = arith.constant 1 : index
    %c0_29 = arith.constant 0 : index
    %c0_30 = arith.constant 0 : index
    %99 = vector.load %arg4[%c1_28, %c0_29, %c0_30] : memref<8x2x32xf32, #tpu.memory_space<vmem>>, vector<1x2x32xf32>
    %100 = vector.shape_cast %99 : vector<1x2x32xf32> to vector<2x32xf32>
    %101 = vector.shape_cast %81 : vector<2x32xf32> to vector<1x2x32xf32>
    tpu.vector_store %arg4[%c1_28, %c0_29, %c0_30], %101 {strides = array<i32>} : memref<8x2x32xf32, #tpu.memory_space<vmem>>, vector<1x2x32xf32>,
    %c6_31 = arith.constant 6 : index
    %c0_32 = arith.constant 0 : index
    %c0_33 = arith.constant 0 : index
    %102 = vector.load %arg5[%c6_31, %c0_32, %c0_33] : memref<8x2x32xf32, #tpu.memory_space<vmem>>, vector<1x2x32xf32>
    %103 = vector.shape_cast %102 : vector<1x2x32xf32> to vector<2x32xf32>
    %104 = vector.shape_cast %97 : vector<2x32xf32> to vector<1x2x32xf32>
    tpu.vector_store %arg5[%c6_31, %c0_32, %c0_33], %104 {strides = array<i32>} : memref<8x2x32xf32, #tpu.memory_space<vmem>>, vector<1x2x32xf32>,
    %105 = arith.truncf %98 : vector<2x64xf32> to vector<2x64xbf16>
    %cst_34 = arith.constant dense<0.000000e+00> : vector<2x256xf32>
    %106 = tpu.matmul %105, %3, %cst_34 {dimension_numbers = #tpu.dot_dimension_numbers<[1], [0], [0], [1], [0, 0, 1, 1], [], []>} : vector<2x64xbf16>, vector<64x256xbf16>, vector<2x256xf32> -> vector<2x256xf32>
    %c2 = arith.constant 2 : index
    %c0_35 = arith.constant 0 : index
    %c0_36 = arith.constant 0 : index
    %107 = vector.load %arg1[%c2, %c0_35, %c0_36] : memref<8x2x128xf32, #tpu.memory_space<vmem>>, vector<1x2x128xf32>
    %108 = vector.shape_cast %107 : vector<1x2x128xf32> to vector<2x128xf32>
    %109 = vector.extract_strided_slice %106 {offsets = [0, 0], sizes = [2, 128], strides = [1, 1]} : vector<2x256xf32> to vector<2x128xf32>
    %110 = arith.addf %108, %109 : vector<2x128xf32>
    %c5 = arith.constant 5 : index
    %c0_37 = arith.constant 0 : index
    %c0_38 = arith.constant 0 : index
    %111 = vector.load %arg2[%c5, %c0_37, %c0_38] : memref<8x2x128xf32, #tpu.memory_space<vmem>>, vector<1x2x128xf32>
    %112 = vector.shape_cast %111 : vector<1x2x128xf32> to vector<2x128xf32>
    %113 = vector.extract_strided_slice %106 {offsets = [0, 128], sizes = [2, 128], strides = [1, 1]} : vector<2x256xf32> to vector<2x128xf32>
    %114 = arith.addf %112, %113 : vector<2x128xf32>
    %115 = vector.extract_strided_slice %110 {offsets = [0, 0], sizes = [2, 96], strides = [1, 1]} : vector<2x128xf32> to vector<2x96xf32>
    %116 = arith.negf %115 : vector<2x96xf32>
    %117 = math.exp %116 : vector<2x96xf32>
    %cst_39 = arith.constant 1.000000e+00 : f32
    %118 = vector.broadcast %cst_39 : f32 to vector<2x96xf32>
    %119 = arith.addf %118, %117 : vector<2x96xf32>
    %120 = arith.divf %118, %119 : vector<2x96xf32>
    %121 = vector.extract_strided_slice %120 {offsets = [0, 0], sizes = [2, 32], strides = [1, 1]} : vector<2x96xf32> to vector<2x32xf32>
    %122 = vector.extract_strided_slice %120 {offsets = [0, 32], sizes = [2, 32], strides = [1, 1]} : vector<2x96xf32> to vector<2x32xf32>
    %123 = vector.extract_strided_slice %120 {offsets = [0, 64], sizes = [2, 32], strides = [1, 1]} : vector<2x96xf32> to vector<2x32xf32>
    %124 = vector.extract_strided_slice %110 {offsets = [0, 96], sizes = [2, 32], strides = [1, 1]} : vector<2x128xf32> to vector<2x32xf32>
    %125 = math.tanh %124 : vector<2x32xf32>
    %126 = arith.mulf %122, %79 : vector<2x32xf32>
    %127 = arith.mulf %121, %125 : vector<2x32xf32>
    %128 = arith.addf %126, %127 : vector<2x32xf32>
    %129 = math.tanh %128 : vector<2x32xf32>
    %130 = arith.mulf %123, %129 : vector<2x32xf32>
    %131 = vector.extract_strided_slice %114 {offsets = [0, 0], sizes = [2, 96], strides = [1, 1]} : vector<2x128xf32> to vector<2x96xf32>
    %132 = arith.negf %131 : vector<2x96xf32>
    %133 = math.exp %132 : vector<2x96xf32>
    %cst_40 = arith.constant 1.000000e+00 : f32
    %134 = vector.broadcast %cst_40 : f32 to vector<2x96xf32>
    %135 = arith.addf %134, %133 : vector<2x96xf32>
    %136 = arith.divf %134, %135 : vector<2x96xf32>
    %137 = vector.extract_strided_slice %136 {offsets = [0, 0], sizes = [2, 32], strides = [1, 1]} : vector<2x96xf32> to vector<2x32xf32>
    %138 = vector.extract_strided_slice %136 {offsets = [0, 32], sizes = [2, 32], strides = [1, 1]} : vector<2x96xf32> to vector<2x32xf32>
    %139 = vector.extract_strided_slice %136 {offsets = [0, 64], sizes = [2, 32], strides = [1, 1]} : vector<2x96xf32> to vector<2x32xf32>
    %140 = vector.extract_strided_slice %114 {offsets = [0, 96], sizes = [2, 32], strides = [1, 1]} : vector<2x128xf32> to vector<2x32xf32>
    %141 = math.tanh %140 : vector<2x32xf32>
    %142 = arith.mulf %138, %95 : vector<2x32xf32>
    %143 = arith.mulf %137, %141 : vector<2x32xf32>
    %144 = arith.addf %142, %143 : vector<2x32xf32>
    %145 = math.tanh %144 : vector<2x32xf32>
    %146 = arith.mulf %139, %145 : vector<2x32xf32>
    %147 = tpu.concatenate %130, %146 in 1 : vector<2x32xf32>, vector<2x32xf32> -> vector<2x64xf32>
    %c2_41 = arith.constant 2 : index
    %c0_42 = arith.constant 0 : index
    %c0_43 = arith.constant 0 : index
    %148 = vector.load %arg4[%c2_41, %c0_42, %c0_43] : memref<8x2x32xf32, #tpu.memory_space<vmem>>, vector<1x2x32xf32>
    %149 = vector.shape_cast %148 : vector<1x2x32xf32> to vector<2x32xf32>
    %150 = vector.shape_cast %130 : vector<2x32xf32> to vector<1x2x32xf32>
    tpu.vector_store %arg4[%c2_41, %c0_42, %c0_43], %150 {strides = array<i32>} : memref<8x2x32xf32, #tpu.memory_space<vmem>>, vector<1x2x32xf32>,
    %c5_44 = arith.constant 5 : index
    %c0_45 = arith.constant 0 : index
    %c0_46 = arith.constant 0 : index
    %151 = vector.load %arg5[%c5_44, %c0_45, %c0_46] : memref<8x2x32xf32, #tpu.memory_space<vmem>>, vector<1x2x32xf32>
    %152 = vector.shape_cast %151 : vector<1x2x32xf32> to vector<2x32xf32>
    %153 = vector.shape_cast %146 : vector<2x32xf32> to vector<1x2x32xf32>
    tpu.vector_store %arg5[%c5_44, %c0_45, %c0_46], %153 {strides = array<i32>} : memref<8x2x32xf32, #tpu.memory_space<vmem>>, vector<1x2x32xf32>,
    %154 = arith.truncf %147 : vector<2x64xf32> to vector<2x64xbf16>
    %cst_47 = arith.constant dense<0.000000e+00> : vector<2x256xf32>
    %155 = tpu.matmul %154, %3, %cst_47 {dimension_numbers = #tpu.dot_dimension_numbers<[1], [0], [0], [1], [0, 0, 1, 1], [], []>} : vector<2x64xbf16>, vector<64x256xbf16>, vector<2x256xf32> -> vector<2x256xf32>
    %c3 = arith.constant 3 : index
    %c0_48 = arith.constant 0 : index
    %c0_49 = arith.constant 0 : index
    %156 = vector.load %arg1[%c3, %c0_48, %c0_49] : memref<8x2x128xf32, #tpu.memory_space<vmem>>, vector<1x2x128xf32>
    %157 = vector.shape_cast %156 : vector<1x2x128xf32> to vector<2x128xf32>
    %158 = vector.extract_strided_slice %155 {offsets = [0, 0], sizes = [2, 128], strides = [1, 1]} : vector<2x256xf32> to vector<2x128xf32>
    %159 = arith.addf %157, %158 : vector<2x128xf32>
    %c4 = arith.constant 4 : index
    %c0_50 = arith.constant 0 : index
    %c0_51 = arith.constant 0 : index
    %160 = vector.load %arg2[%c4, %c0_50, %c0_51] : memref<8x2x128xf32, #tpu.memory_space<vmem>>, vector<1x2x128xf32>
    %161 = vector.shape_cast %160 : vector<1x2x128xf32> to vector<2x128xf32>
    %162 = vector.extract_strided_slice %155 {offsets = [0, 128], sizes = [2, 128], strides = [1, 1]} : vector<2x256xf32> to vector<2x128xf32>
    %163 = arith.addf %161, %162 : vector<2x128xf32>
    %164 = vector.extract_strided_slice %159 {offsets = [0, 0], sizes = [2, 96], strides = [1, 1]} : vector<2x128xf32> to vector<2x96xf32>
    %165 = arith.negf %164 : vector<2x96xf32>
    %166 = math.exp %165 : vector<2x96xf32>
    %cst_52 = arith.constant 1.000000e+00 : f32
    %167 = vector.broadcast %cst_52 : f32 to vector<2x96xf32>
    %168 = arith.addf %167, %166 : vector<2x96xf32>
    %169 = arith.divf %167, %168 : vector<2x96xf32>
    %170 = vector.extract_strided_slice %169 {offsets = [0, 0], sizes = [2, 32], strides = [1, 1]} : vector<2x96xf32> to vector<2x32xf32>
    %171 = vector.extract_strided_slice %169 {offsets = [0, 32], sizes = [2, 32], strides = [1, 1]} : vector<2x96xf32> to vector<2x32xf32>
    %172 = vector.extract_strided_slice %169 {offsets = [0, 64], sizes = [2, 32], strides = [1, 1]} : vector<2x96xf32> to vector<2x32xf32>
    %173 = vector.extract_strided_slice %159 {offsets = [0, 96], sizes = [2, 32], strides = [1, 1]} : vector<2x128xf32> to vector<2x32xf32>
    %174 = math.tanh %173 : vector<2x32xf32>
    %175 = arith.mulf %171, %128 : vector<2x32xf32>
    %176 = arith.mulf %170, %174 : vector<2x32xf32>
    %177 = arith.addf %175, %176 : vector<2x32xf32>
    %178 = math.tanh %177 : vector<2x32xf32>
    %179 = arith.mulf %172, %178 : vector<2x32xf32>
    %180 = vector.extract_strided_slice %163 {offsets = [0, 0], sizes = [2, 96], strides = [1, 1]} : vector<2x128xf32> to vector<2x96xf32>
    %181 = arith.negf %180 : vector<2x96xf32>
    %182 = math.exp %181 : vector<2x96xf32>
    %cst_53 = arith.constant 1.000000e+00 : f32
    %183 = vector.broadcast %cst_53 : f32 to vector<2x96xf32>
    %184 = arith.addf %183, %182 : vector<2x96xf32>
    %185 = arith.divf %183, %184 : vector<2x96xf32>
    %186 = vector.extract_strided_slice %185 {offsets = [0, 0], sizes = [2, 32], strides = [1, 1]} : vector<2x96xf32> to vector<2x32xf32>
    %187 = vector.extract_strided_slice %185 {offsets = [0, 32], sizes = [2, 32], strides = [1, 1]} : vector<2x96xf32> to vector<2x32xf32>
    %188 = vector.extract_strided_slice %185 {offsets = [0, 64], sizes = [2, 32], strides = [1, 1]} : vector<2x96xf32> to vector<2x32xf32>
    %189 = vector.extract_strided_slice %163 {offsets = [0, 96], sizes = [2, 32], strides = [1, 1]} : vector<2x128xf32> to vector<2x32xf32>
    %190 = math.tanh %189 : vector<2x32xf32>
    %191 = arith.mulf %187, %144 : vector<2x32xf32>
    %192 = arith.mulf %186, %190 : vector<2x32xf32>
    %193 = arith.addf %191, %192 : vector<2x32xf32>
    %194 = math.tanh %193 : vector<2x32xf32>
    %195 = arith.mulf %188, %194 : vector<2x32xf32>
    %196 = tpu.concatenate %179, %195 in 1 : vector<2x32xf32>, vector<2x32xf32> -> vector<2x64xf32>
    %c3_54 = arith.constant 3 : index
    %c0_55 = arith.constant 0 : index
    %c0_56 = arith.constant 0 : index
    %197 = vector.load %arg4[%c3_54, %c0_55, %c0_56] : memref<8x2x32xf32, #tpu.memory_space<vmem>>, vector<1x2x32xf32>
    %198 = vector.shape_cast %197 : vector<1x2x32xf32> to vector<2x32xf32>
    %199 = vector.shape_cast %179 : vector<2x32xf32> to vector<1x2x32xf32>
    tpu.vector_store %arg4[%c3_54, %c0_55, %c0_56], %199 {strides = array<i32>} : memref<8x2x32xf32, #tpu.memory_space<vmem>>, vector<1x2x32xf32>,
    %c4_57 = arith.constant 4 : index
    %c0_58 = arith.constant 0 : index
    %c0_59 = arith.constant 0 : index
    %200 = vector.load %arg5[%c4_57, %c0_58, %c0_59] : memref<8x2x32xf32, #tpu.memory_space<vmem>>, vector<1x2x32xf32>
    %201 = vector.shape_cast %200 : vector<1x2x32xf32> to vector<2x32xf32>
    %202 = vector.shape_cast %195 : vector<2x32xf32> to vector<1x2x32xf32>
    tpu.vector_store %arg5[%c4_57, %c0_58, %c0_59], %202 {strides = array<i32>} : memref<8x2x32xf32, #tpu.memory_space<vmem>>, vector<1x2x32xf32>,
    %203 = arith.truncf %196 : vector<2x64xf32> to vector<2x64xbf16>
    %cst_60 = arith.constant dense<0.000000e+00> : vector<2x256xf32>
    %204 = tpu.matmul %203, %3, %cst_60 {dimension_numbers = #tpu.dot_dimension_numbers<[1], [0], [0], [1], [0, 0, 1, 1], [], []>} : vector<2x64xbf16>, vector<64x256xbf16>, vector<2x256xf32> -> vector<2x256xf32>
    %c4_61 = arith.constant 4 : index
    %c0_62 = arith.constant 0 : index
    %c0_63 = arith.constant 0 : index
    %205 = vector.load %arg1[%c4_61, %c0_62, %c0_63] : memref<8x2x128xf32, #tpu.memory_space<vmem>>, vector<1x2x128xf32>
    %206 = vector.shape_cast %205 : vector<1x2x128xf32> to vector<2x128xf32>
    %207 = vector.extract_strided_slice %204 {offsets = [0, 0], sizes = [2, 128], strides = [1, 1]} : vector<2x256xf32> to vector<2x128xf32>
    %208 = arith.addf %206, %207 : vector<2x128xf32>
    %c3_64 = arith.constant 3 : index
    %c0_65 = arith.constant 0 : index
    %c0_66 = arith.constant 0 : index
    %209 = vector.load %arg2[%c3_64, %c0_65, %c0_66] : memref<8x2x128xf32, #tpu.memory_space<vmem>>, vector<1x2x128xf32>
    %210 = vector.shape_cast %209 : vector<1x2x128xf32> to vector<2x128xf32>
    %211 = vector.extract_strided_slice %204 {offsets = [0, 128], sizes = [2, 128], strides = [1, 1]} : vector<2x256xf32> to vector<2x128xf32>
    %212 = arith.addf %210, %211 : vector<2x128xf32>
    %213 = vector.extract_strided_slice %208 {offsets = [0, 0], sizes = [2, 96], strides = [1, 1]} : vector<2x128xf32> to vector<2x96xf32>
    %214 = arith.negf %213 : vector<2x96xf32>
    %215 = math.exp %214 : vector<2x96xf32>
    %cst_67 = arith.constant 1.000000e+00 : f32
    %216 = vector.broadcast %cst_67 : f32 to vector<2x96xf32>
    %217 = arith.addf %216, %215 : vector<2x96xf32>
    %218 = arith.divf %216, %217 : vector<2x96xf32>
    %219 = vector.extract_strided_slice %218 {offsets = [0, 0], sizes = [2, 32], strides = [1, 1]} : vector<2x96xf32> to vector<2x32xf32>
    %220 = vector.extract_strided_slice %218 {offsets = [0, 32], sizes = [2, 32], strides = [1, 1]} : vector<2x96xf32> to vector<2x32xf32>
    %221 = vector.extract_strided_slice %218 {offsets = [0, 64], sizes = [2, 32], strides = [1, 1]} : vector<2x96xf32> to vector<2x32xf32>
    %222 = vector.extract_strided_slice %208 {offsets = [0, 96], sizes = [2, 32], strides = [1, 1]} : vector<2x128xf32> to vector<2x32xf32>
    %223 = math.tanh %222 : vector<2x32xf32>
    %224 = arith.mulf %220, %177 : vector<2x32xf32>
    %225 = arith.mulf %219, %223 : vector<2x32xf32>
    %226 = arith.addf %224, %225 : vector<2x32xf32>
    %227 = math.tanh %226 : vector<2x32xf32>
    %228 = arith.mulf %221, %227 : vector<2x32xf32>
    %229 = vector.extract_strided_slice %212 {offsets = [0, 0], sizes = [2, 96], strides = [1, 1]} : vector<2x128xf32> to vector<2x96xf32>
    %230 = arith.negf %229 : vector<2x96xf32>
    %231 = math.exp %230 : vector<2x96xf32>
    %cst_68 = arith.constant 1.000000e+00 : f32
    %232 = vector.broadcast %cst_68 : f32 to vector<2x96xf32>
    %233 = arith.addf %232, %231 : vector<2x96xf32>
    %234 = arith.divf %232, %233 : vector<2x96xf32>
    %235 = vector.extract_strided_slice %234 {offsets = [0, 0], sizes = [2, 32], strides = [1, 1]} : vector<2x96xf32> to vector<2x32xf32>
    %236 = vector.extract_strided_slice %234 {offsets = [0, 32], sizes = [2, 32], strides = [1, 1]} : vector<2x96xf32> to vector<2x32xf32>
    %237 = vector.extract_strided_slice %234 {offsets = [0, 64], sizes = [2, 32], strides = [1, 1]} : vector<2x96xf32> to vector<2x32xf32>
    %238 = vector.extract_strided_slice %212 {offsets = [0, 96], sizes = [2, 32], strides = [1, 1]} : vector<2x128xf32> to vector<2x32xf32>
    %239 = math.tanh %238 : vector<2x32xf32>
    %240 = arith.mulf %236, %193 : vector<2x32xf32>
    %241 = arith.mulf %235, %239 : vector<2x32xf32>
    %242 = arith.addf %240, %241 : vector<2x32xf32>
    %243 = math.tanh %242 : vector<2x32xf32>
    %244 = arith.mulf %237, %243 : vector<2x32xf32>
    %245 = tpu.concatenate %228, %244 in 1 : vector<2x32xf32>, vector<2x32xf32> -> vector<2x64xf32>
    %c4_69 = arith.constant 4 : index
    %c0_70 = arith.constant 0 : index
    %c0_71 = arith.constant 0 : index
    %246 = vector.load %arg4[%c4_69, %c0_70, %c0_71] : memref<8x2x32xf32, #tpu.memory_space<vmem>>, vector<1x2x32xf32>
    %247 = vector.shape_cast %246 : vector<1x2x32xf32> to vector<2x32xf32>
    %248 = vector.shape_cast %228 : vector<2x32xf32> to vector<1x2x32xf32>
    tpu.vector_store %arg4[%c4_69, %c0_70, %c0_71], %248 {strides = array<i32>} : memref<8x2x32xf32, #tpu.memory_space<vmem>>, vector<1x2x32xf32>,
    %c3_72 = arith.constant 3 : index
    %c0_73 = arith.constant 0 : index
    %c0_74 = arith.constant 0 : index
    %249 = vector.load %arg5[%c3_72, %c0_73, %c0_74] : memref<8x2x32xf32, #tpu.memory_space<vmem>>, vector<1x2x32xf32>
    %250 = vector.shape_cast %249 : vector<1x2x32xf32> to vector<2x32xf32>
    %251 = vector.shape_cast %244 : vector<2x32xf32> to vector<1x2x32xf32>
    tpu.vector_store %arg5[%c3_72, %c0_73, %c0_74], %251 {strides = array<i32>} : memref<8x2x32xf32, #tpu.memory_space<vmem>>, vector<1x2x32xf32>,
    %252 = arith.truncf %245 : vector<2x64xf32> to vector<2x64xbf16>
    %cst_75 = arith.constant dense<0.000000e+00> : vector<2x256xf32>
    %253 = tpu.matmul %252, %3, %cst_75 {dimension_numbers = #tpu.dot_dimension_numbers<[1], [0], [0], [1], [0, 0, 1, 1], [], []>} : vector<2x64xbf16>, vector<64x256xbf16>, vector<2x256xf32> -> vector<2x256xf32>
    %c5_76 = arith.constant 5 : index
    %c0_77 = arith.constant 0 : index
    %c0_78 = arith.constant 0 : index
    %254 = vector.load %arg1[%c5_76, %c0_77, %c0_78] : memref<8x2x128xf32, #tpu.memory_space<vmem>>, vector<1x2x128xf32>
    %255 = vector.shape_cast %254 : vector<1x2x128xf32> to vector<2x128xf32>
    %256 = vector.extract_strided_slice %253 {offsets = [0, 0], sizes = [2, 128], strides = [1, 1]} : vector<2x256xf32> to vector<2x128xf32>
    %257 = arith.addf %255, %256 : vector<2x128xf32>
    %c2_79 = arith.constant 2 : index
    %c0_80 = arith.constant 0 : index
    %c0_81 = arith.constant 0 : index
    %258 = vector.load %arg2[%c2_79, %c0_80, %c0_81] : memref<8x2x128xf32, #tpu.memory_space<vmem>>, vector<1x2x128xf32>
    %259 = vector.shape_cast %258 : vector<1x2x128xf32> to vector<2x128xf32>
    %260 = vector.extract_strided_slice %253 {offsets = [0, 128], sizes = [2, 128], strides = [1, 1]} : vector<2x256xf32> to vector<2x128xf32>
    %261 = arith.addf %259, %260 : vector<2x128xf32>
    %262 = vector.extract_strided_slice %257 {offsets = [0, 0], sizes = [2, 96], strides = [1, 1]} : vector<2x128xf32> to vector<2x96xf32>
    %263 = arith.negf %262 : vector<2x96xf32>
    %264 = math.exp %263 : vector<2x96xf32>
    %cst_82 = arith.constant 1.000000e+00 : f32
    %265 = vector.broadcast %cst_82 : f32 to vector<2x96xf32>
    %266 = arith.addf %265, %264 : vector<2x96xf32>
    %267 = arith.divf %265, %266 : vector<2x96xf32>
    %268 = vector.extract_strided_slice %267 {offsets = [0, 0], sizes = [2, 32], strides = [1, 1]} : vector<2x96xf32> to vector<2x32xf32>
    %269 = vector.extract_strided_slice %267 {offsets = [0, 32], sizes = [2, 32], strides = [1, 1]} : vector<2x96xf32> to vector<2x32xf32>
    %270 = vector.extract_strided_slice %267 {offsets = [0, 64], sizes = [2, 32], strides = [1, 1]} : vector<2x96xf32> to vector<2x32xf32>
    %271 = vector.extract_strided_slice %257 {offsets = [0, 96], sizes = [2, 32], strides = [1, 1]} : vector<2x128xf32> to vector<2x32xf32>
    %272 = math.tanh %271 : vector<2x32xf32>
    %273 = arith.mulf %269, %226 : vector<2x32xf32>
    %274 = arith.mulf %268, %272 : vector<2x32xf32>
    %275 = arith.addf %273, %274 : vector<2x32xf32>
    %276 = math.tanh %275 : vector<2x32xf32>
    %277 = arith.mulf %270, %276 : vector<2x32xf32>
    %278 = vector.extract_strided_slice %261 {offsets = [0, 0], sizes = [2, 96], strides = [1, 1]} : vector<2x128xf32> to vector<2x96xf32>
    %279 = arith.negf %278 : vector<2x96xf32>
    %280 = math.exp %279 : vector<2x96xf32>
    %cst_83 = arith.constant 1.000000e+00 : f32
    %281 = vector.broadcast %cst_83 : f32 to vector<2x96xf32>
    %282 = arith.addf %281, %280 : vector<2x96xf32>
    %283 = arith.divf %281, %282 : vector<2x96xf32>
    %284 = vector.extract_strided_slice %283 {offsets = [0, 0], sizes = [2, 32], strides = [1, 1]} : vector<2x96xf32> to vector<2x32xf32>
    %285 = vector.extract_strided_slice %283 {offsets = [0, 32], sizes = [2, 32], strides = [1, 1]} : vector<2x96xf32> to vector<2x32xf32>
    %286 = vector.extract_strided_slice %283 {offsets = [0, 64], sizes = [2, 32], strides = [1, 1]} : vector<2x96xf32> to vector<2x32xf32>
    %287 = vector.extract_strided_slice %261 {offsets = [0, 96], sizes = [2, 32], strides = [1, 1]} : vector<2x128xf32> to vector<2x32xf32>
    %288 = math.tanh %287 : vector<2x32xf32>
    %289 = arith.mulf %285, %242 : vector<2x32xf32>
    %290 = arith.mulf %284, %288 : vector<2x32xf32>
    %291 = arith.addf %289, %290 : vector<2x32xf32>
    %292 = math.tanh %291 : vector<2x32xf32>
    %293 = arith.mulf %286, %292 : vector<2x32xf32>
    %294 = tpu.concatenate %277, %293 in 1 : vector<2x32xf32>, vector<2x32xf32> -> vector<2x64xf32>
    %c5_84 = arith.constant 5 : index
    %c0_85 = arith.constant 0 : index
    %c0_86 = arith.constant 0 : index
    %295 = vector.load %arg4[%c5_84, %c0_85, %c0_86] : memref<8x2x32xf32, #tpu.memory_space<vmem>>, vector<1x2x32xf32>
    %296 = vector.shape_cast %295 : vector<1x2x32xf32> to vector<2x32xf32>
    %297 = vector.shape_cast %277 : vector<2x32xf32> to vector<1x2x32xf32>
    tpu.vector_store %arg4[%c5_84, %c0_85, %c0_86], %297 {strides = array<i32>} : memref<8x2x32xf32, #tpu.memory_space<vmem>>, vector<1x2x32xf32>,
    %c2_87 = arith.constant 2 : index
    %c0_88 = arith.constant 0 : index
    %c0_89 = arith.constant 0 : index
    %298 = vector.load %arg5[%c2_87, %c0_88, %c0_89] : memref<8x2x32xf32, #tpu.memory_space<vmem>>, vector<1x2x32xf32>
    %299 = vector.shape_cast %298 : vector<1x2x32xf32> to vector<2x32xf32>
    %300 = vector.shape_cast %293 : vector<2x32xf32> to vector<1x2x32xf32>
    tpu.vector_store %arg5[%c2_87, %c0_88, %c0_89], %300 {strides = array<i32>} : memref<8x2x32xf32, #tpu.memory_space<vmem>>, vector<1x2x32xf32>,
    %301 = arith.truncf %294 : vector<2x64xf32> to vector<2x64xbf16>
    %cst_90 = arith.constant dense<0.000000e+00> : vector<2x256xf32>
    %302 = tpu.matmul %301, %3, %cst_90 {dimension_numbers = #tpu.dot_dimension_numbers<[1], [0], [0], [1], [0, 0, 1, 1], [], []>} : vector<2x64xbf16>, vector<64x256xbf16>, vector<2x256xf32> -> vector<2x256xf32>
    %c6_91 = arith.constant 6 : index
    %c0_92 = arith.constant 0 : index
    %c0_93 = arith.constant 0 : index
    %303 = vector.load %arg1[%c6_91, %c0_92, %c0_93] : memref<8x2x128xf32, #tpu.memory_space<vmem>>, vector<1x2x128xf32>
    %304 = vector.shape_cast %303 : vector<1x2x128xf32> to vector<2x128xf32>
    %305 = vector.extract_strided_slice %302 {offsets = [0, 0], sizes = [2, 128], strides = [1, 1]} : vector<2x256xf32> to vector<2x128xf32>
    %306 = arith.addf %304, %305 : vector<2x128xf32>
    %c1_94 = arith.constant 1 : index
    %c0_95 = arith.constant 0 : index
    %c0_96 = arith.constant 0 : index
    %307 = vector.load %arg2[%c1_94, %c0_95, %c0_96] : memref<8x2x128xf32, #tpu.memory_space<vmem>>, vector<1x2x128xf32>
    %308 = vector.shape_cast %307 : vector<1x2x128xf32> to vector<2x128xf32>
    %309 = vector.extract_strided_slice %302 {offsets = [0, 128], sizes = [2, 128], strides = [1, 1]} : vector<2x256xf32> to vector<2x128xf32>
    %310 = arith.addf %308, %309 : vector<2x128xf32>
    %311 = vector.extract_strided_slice %306 {offsets = [0, 0], sizes = [2, 96], strides = [1, 1]} : vector<2x128xf32> to vector<2x96xf32>
    %312 = arith.negf %311 : vector<2x96xf32>
    %313 = math.exp %312 : vector<2x96xf32>
    %cst_97 = arith.constant 1.000000e+00 : f32
    %314 = vector.broadcast %cst_97 : f32 to vector<2x96xf32>
    %315 = arith.addf %314, %313 : vector<2x96xf32>
    %316 = arith.divf %314, %315 : vector<2x96xf32>
    %317 = vector.extract_strided_slice %316 {offsets = [0, 0], sizes = [2, 32], strides = [1, 1]} : vector<2x96xf32> to vector<2x32xf32>
    %318 = vector.extract_strided_slice %316 {offsets = [0, 32], sizes = [2, 32], strides = [1, 1]} : vector<2x96xf32> to vector<2x32xf32>
    %319 = vector.extract_strided_slice %316 {offsets = [0, 64], sizes = [2, 32], strides = [1, 1]} : vector<2x96xf32> to vector<2x32xf32>
    %320 = vector.extract_strided_slice %306 {offsets = [0, 96], sizes = [2, 32], strides = [1, 1]} : vector<2x128xf32> to vector<2x32xf32>
    %321 = math.tanh %320 : vector<2x32xf32>
    %322 = arith.mulf %318, %275 : vector<2x32xf32>
    %323 = arith.mulf %317, %321 : vector<2x32xf32>
    %324 = arith.addf %322, %323 : vector<2x32xf32>
    %325 = math.tanh %324 : vector<2x32xf32>
    %326 = arith.mulf %319, %325 : vector<2x32xf32>
    %327 = vector.extract_strided_slice %310 {offsets = [0, 0], sizes = [2, 96], strides = [1, 1]} : vector<2x128xf32> to vector<2x96xf32>
    %328 = arith.negf %327 : vector<2x96xf32>
    %329 = math.exp %328 : vector<2x96xf32>
    %cst_98 = arith.constant 1.000000e+00 : f32
    %330 = vector.broadcast %cst_98 : f32 to vector<2x96xf32>
    %331 = arith.addf %330, %329 : vector<2x96xf32>
    %332 = arith.divf %330, %331 : vector<2x96xf32>
    %333 = vector.extract_strided_slice %332 {offsets = [0, 0], sizes = [2, 32], strides = [1, 1]} : vector<2x96xf32> to vector<2x32xf32>
    %334 = vector.extract_strided_slice %332 {offsets = [0, 32], sizes = [2, 32], strides = [1, 1]} : vector<2x96xf32> to vector<2x32xf32>
    %335 = vector.extract_strided_slice %332 {offsets = [0, 64], sizes = [2, 32], strides = [1, 1]} : vector<2x96xf32> to vector<2x32xf32>
    %336 = vector.extract_strided_slice %310 {offsets = [0, 96], sizes = [2, 32], strides = [1, 1]} : vector<2x128xf32> to vector<2x32xf32>
    %337 = math.tanh %336 : vector<2x32xf32>
    %338 = arith.mulf %334, %291 : vector<2x32xf32>
    %339 = arith.mulf %333, %337 : vector<2x32xf32>
    %340 = arith.addf %338, %339 : vector<2x32xf32>
    %341 = math.tanh %340 : vector<2x32xf32>
    %342 = arith.mulf %335, %341 : vector<2x32xf32>
    %343 = tpu.concatenate %326, %342 in 1 : vector<2x32xf32>, vector<2x32xf32> -> vector<2x64xf32>
    %c6_99 = arith.constant 6 : index
    %c0_100 = arith.constant 0 : index
    %c0_101 = arith.constant 0 : index
    %344 = vector.load %arg4[%c6_99, %c0_100, %c0_101] : memref<8x2x32xf32, #tpu.memory_space<vmem>>, vector<1x2x32xf32>
    %345 = vector.shape_cast %344 : vector<1x2x32xf32> to vector<2x32xf32>
    %346 = vector.shape_cast %326 : vector<2x32xf32> to vector<1x2x32xf32>
    tpu.vector_store %arg4[%c6_99, %c0_100, %c0_101], %346 {strides = array<i32>} : memref<8x2x32xf32, #tpu.memory_space<vmem>>, vector<1x2x32xf32>,
    %c1_102 = arith.constant 1 : index
    %c0_103 = arith.constant 0 : index
    %c0_104 = arith.constant 0 : index
    %347 = vector.load %arg5[%c1_102, %c0_103, %c0_104] : memref<8x2x32xf32, #tpu.memory_space<vmem>>, vector<1x2x32xf32>
    %348 = vector.shape_cast %347 : vector<1x2x32xf32> to vector<2x32xf32>
    %349 = vector.shape_cast %342 : vector<2x32xf32> to vector<1x2x32xf32>
    tpu.vector_store %arg5[%c1_102, %c0_103, %c0_104], %349 {strides = array<i32>} : memref<8x2x32xf32, #tpu.memory_space<vmem>>, vector<1x2x32xf32>,
    %350 = arith.truncf %343 : vector<2x64xf32> to vector<2x64xbf16>
    %cst_105 = arith.constant dense<0.000000e+00> : vector<2x256xf32>
    %351 = tpu.matmul %350, %3, %cst_105 {dimension_numbers = #tpu.dot_dimension_numbers<[1], [0], [0], [1], [0, 0, 1, 1], [], []>} : vector<2x64xbf16>, vector<64x256xbf16>, vector<2x256xf32> -> vector<2x256xf32>
    %c7_106 = arith.constant 7 : index
    %c0_107 = arith.constant 0 : index
    %c0_108 = arith.constant 0 : index
    %352 = vector.load %arg1[%c7_106, %c0_107, %c0_108] : memref<8x2x128xf32, #tpu.memory_space<vmem>>, vector<1x2x128xf32>
    %353 = vector.shape_cast %352 : vector<1x2x128xf32> to vector<2x128xf32>
    %354 = vector.extract_strided_slice %351 {offsets = [0, 0], sizes = [2, 128], strides = [1, 1]} : vector<2x256xf32> to vector<2x128xf32>
    %355 = arith.addf %353, %354 : vector<2x128xf32>
    %c0_109 = arith.constant 0 : index
    %c0_110 = arith.constant 0 : index
    %c0_111 = arith.constant 0 : index
    %356 = vector.load %arg2[%c0_109, %c0_110, %c0_111] : memref<8x2x128xf32, #tpu.memory_space<vmem>>, vector<1x2x128xf32>
    %357 = vector.shape_cast %356 : vector<1x2x128xf32> to vector<2x128xf32>
    %358 = vector.extract_strided_slice %351 {offsets = [0, 128], sizes = [2, 128], strides = [1, 1]} : vector<2x256xf32> to vector<2x128xf32>
    %359 = arith.addf %357, %358 : vector<2x128xf32>
    %360 = vector.extract_strided_slice %355 {offsets = [0, 0], sizes = [2, 96], strides = [1, 1]} : vector<2x128xf32> to vector<2x96xf32>
    %361 = arith.negf %360 : vector<2x96xf32>
    %362 = math.exp %361 : vector<2x96xf32>
    %cst_112 = arith.constant 1.000000e+00 : f32
    %363 = vector.broadcast %cst_112 : f32 to vector<2x96xf32>
    %364 = arith.addf %363, %362 : vector<2x96xf32>
    %365 = arith.divf %363, %364 : vector<2x96xf32>
    %366 = vector.extract_strided_slice %365 {offsets = [0, 0], sizes = [2, 32], strides = [1, 1]} : vector<2x96xf32> to vector<2x32xf32>
    %367 = vector.extract_strided_slice %365 {offsets = [0, 32], sizes = [2, 32], strides = [1, 1]} : vector<2x96xf32> to vector<2x32xf32>
    %368 = vector.extract_strided_slice %365 {offsets = [0, 64], sizes = [2, 32], strides = [1, 1]} : vector<2x96xf32> to vector<2x32xf32>
    %369 = vector.extract_strided_slice %355 {offsets = [0, 96], sizes = [2, 32], strides = [1, 1]} : vector<2x128xf32> to vector<2x32xf32>
    %370 = math.tanh %369 : vector<2x32xf32>
    %371 = arith.mulf %367, %324 : vector<2x32xf32>
    %372 = arith.mulf %366, %370 : vector<2x32xf32>
    %373 = arith.addf %371, %372 : vector<2x32xf32>
    %374 = math.tanh %373 : vector<2x32xf32>
    %375 = arith.mulf %368, %374 : vector<2x32xf32>
    %376 = vector.extract_strided_slice %359 {offsets = [0, 0], sizes = [2, 96], strides = [1, 1]} : vector<2x128xf32> to vector<2x96xf32>
    %377 = arith.negf %376 : vector<2x96xf32>
    %378 = math.exp %377 : vector<2x96xf32>
    %cst_113 = arith.constant 1.000000e+00 : f32
    %379 = vector.broadcast %cst_113 : f32 to vector<2x96xf32>
    %380 = arith.addf %379, %378 : vector<2x96xf32>
    %381 = arith.divf %379, %380 : vector<2x96xf32>
    %382 = vector.extract_strided_slice %381 {offsets = [0, 0], sizes = [2, 32], strides = [1, 1]} : vector<2x96xf32> to vector<2x32xf32>
    %383 = vector.extract_strided_slice %381 {offsets = [0, 32], sizes = [2, 32], strides = [1, 1]} : vector<2x96xf32> to vector<2x32xf32>
    %384 = vector.extract_strided_slice %381 {offsets = [0, 64], sizes = [2, 32], strides = [1, 1]} : vector<2x96xf32> to vector<2x32xf32>
    %385 = vector.extract_strided_slice %359 {offsets = [0, 96], sizes = [2, 32], strides = [1, 1]} : vector<2x128xf32> to vector<2x32xf32>
    %386 = math.tanh %385 : vector<2x32xf32>
    %387 = arith.mulf %383, %340 : vector<2x32xf32>
    %388 = arith.mulf %382, %386 : vector<2x32xf32>
    %389 = arith.addf %387, %388 : vector<2x32xf32>
    %390 = math.tanh %389 : vector<2x32xf32>
    %391 = arith.mulf %384, %390 : vector<2x32xf32>
    %392 = tpu.concatenate %375, %391 in 1 : vector<2x32xf32>, vector<2x32xf32> -> vector<2x64xf32>
    %c7_114 = arith.constant 7 : index
    %c0_115 = arith.constant 0 : index
    %c0_116 = arith.constant 0 : index
    %393 = vector.load %arg4[%c7_114, %c0_115, %c0_116] : memref<8x2x32xf32, #tpu.memory_space<vmem>>, vector<1x2x32xf32>
    %394 = vector.shape_cast %393 : vector<1x2x32xf32> to vector<2x32xf32>
    %395 = vector.shape_cast %375 : vector<2x32xf32> to vector<1x2x32xf32>
    tpu.vector_store %arg4[%c7_114, %c0_115, %c0_116], %395 {strides = array<i32>} : memref<8x2x32xf32, #tpu.memory_space<vmem>>, vector<1x2x32xf32>,
    %c0_117 = arith.constant 0 : index
    %c0_118 = arith.constant 0 : index
    %c0_119 = arith.constant 0 : index
    %396 = vector.load %arg5[%c0_117, %c0_118, %c0_119] : memref<8x2x32xf32, #tpu.memory_space<vmem>>, vector<1x2x32xf32>
    %397 = vector.shape_cast %396 : vector<1x2x32xf32> to vector<2x32xf32>
    %398 = vector.shape_cast %391 : vector<2x32xf32> to vector<1x2x32xf32>
    tpu.vector_store %arg5[%c0_117, %c0_118, %c0_119], %398 {strides = array<i32>} : memref<8x2x32xf32, #tpu.memory_space<vmem>>, vector<1x2x32xf32>,
    %c0_120 = arith.constant 0 : index
    %c0_121 = arith.constant 0 : index
    %399 = vector.load %arg8[%c0_120, %c0_121] : memref<2x64xf32, #tpu.memory_space<vmem>>, vector<2x64xf32>
    tpu.vector_store %arg8[%c0_120, %c0_121], %392 {strides = array<i32>} : memref<2x64xf32, #tpu.memory_space<vmem>>, vector<2x64xf32>,
    %c0_122 = arith.constant 0 : index
    %c0_123 = arith.constant 0 : index
    %400 = vector.load %arg9[%c0_122, %c0_123] : memref<2x32xf32, #tpu.memory_space<vmem>>, vector<2x32xf32>
    tpu.vector_store %arg9[%c0_122, %c0_123], %373 {strides = array<i32>} : memref<2x32xf32, #tpu.memory_space<vmem>>, vector<2x32xf32>,
    %c0_124 = arith.constant 0 : index
    %c0_125 = arith.constant 0 : index
    %401 = vector.load %arg10[%c0_124, %c0_125] : memref<2x32xf32, #tpu.memory_space<vmem>>, vector<2x32xf32>
    tpu.vector_store %arg10[%c0_124, %c0_125], %389 {strides = array<i32>} : memref<2x32xf32, #tpu.memory_space<vmem>>, vector<2x32xf32>,
    %c0_i32_126 = arith.constant 0 : i32
    %402 = arith.cmpi eq, %arg0, %c0_i32_126 : i32
    %403 = arith.extui %402 : i1 to i32
    %c0_i32_127 = arith.constant 0 : i32
    %404 = arith.cmpi ne, %403, %c0_i32_127 : i32
    scf.if %404 {
      %c0_128 = arith.constant 0 : index
      %c0_129 = arith.constant 0 : index
      %c0_130 = arith.constant 0 : index
      %405 = vector.load %arg6[%c0_128, %c0_129, %c0_130] : memref<2x2x32xf32, #tpu.memory_space<vmem>>, vector<1x2x32xf32>
      %406 = vector.shape_cast %405 : vector<1x2x32xf32> to vector<2x32xf32>
      %407 = vector.shape_cast %375 : vector<2x32xf32> to vector<1x2x32xf32>
      tpu.vector_store %arg6[%c0_128, %c0_129, %c0_130], %407 {strides = array<i32>} : memref<2x2x32xf32, #tpu.memory_space<vmem>>, vector<1x2x32xf32>,
      %c1_131 = arith.constant 1 : index
      %c0_132 = arith.constant 0 : index
      %c0_133 = arith.constant 0 : index
      %408 = vector.load %arg6[%c1_131, %c0_132, %c0_133] : memref<2x2x32xf32, #tpu.memory_space<vmem>>, vector<1x2x32xf32>
      %409 = vector.shape_cast %408 : vector<1x2x32xf32> to vector<2x32xf32>
      %410 = vector.shape_cast %391 : vector<2x32xf32> to vector<1x2x32xf32>
      tpu.vector_store %arg6[%c1_131, %c0_132, %c0_133], %410 {strides = array<i32>} : memref<2x2x32xf32, #tpu.memory_space<vmem>>, vector<1x2x32xf32>,
      %c0_134 = arith.constant 0 : index
      %c0_135 = arith.constant 0 : index
      %c0_136 = arith.constant 0 : index
      %411 = vector.load %arg7[%c0_134, %c0_135, %c0_136] : memref<2x2x32xf32, #tpu.memory_space<vmem>>, vector<1x2x32xf32>
      %412 = vector.shape_cast %411 : vector<1x2x32xf32> to vector<2x32xf32>
      %413 = vector.shape_cast %373 : vector<2x32xf32> to vector<1x2x32xf32>
      tpu.vector_store %arg7[%c0_134, %c0_135, %c0_136], %413 {strides = array<i32>} : memref<2x2x32xf32, #tpu.memory_space<vmem>>, vector<1x2x32xf32>,
      %c1_137 = arith.constant 1 : index
      %c0_138 = arith.constant 0 : index
      %c0_139 = arith.constant 0 : index
      %414 = vector.load %arg7[%c1_137, %c0_138, %c0_139] : memref<2x2x32xf32, #tpu.memory_space<vmem>>, vector<1x2x32xf32>
      %415 = vector.shape_cast %414 : vector<1x2x32xf32> to vector<2x32xf32>
      %416 = vector.shape_cast %389 : vector<2x32xf32> to vector<1x2x32xf32>
      tpu.vector_store %arg7[%c1_137, %c0_138, %c0_139], %416 {strides = array<i32>} : memref<2x2x32xf32, #tpu.memory_space<vmem>>, vector<1x2x32xf32>,
    } else {
    }
    return
  }
  func.func @transform_0(%arg0: i32) -> (i32, i32, i32) {
    %c0_i32 = arith.constant 0 : i32
    %c0_i32_0 = arith.constant 0 : i32
    %c0_i32_1 = arith.constant 0 : i32
    return %arg0, %c0_i32, %c0_i32_0 : i32, i32, i32
  }
  func.func @transform_1(%arg0: i32) -> (i32, i32, i32) {
    %c0_i32 = arith.constant 0 : i32
    %0 = arith.subi %c0_i32, %arg0 : i32
    %c0_i32_0 = arith.constant 0 : i32
    %c1_i32 = arith.constant 1 : i32
    %c0_i32_1 = arith.constant 0 : i32
    return %0, %c0_i32_0, %c1_i32 : i32, i32, i32
  }
  func.func @transform_2(%arg0: i32) -> (i32, i32) {
    %c0_i32 = arith.constant 0 : i32
    %c0_i32_0 = arith.constant 0 : i32
    %c0_i32_1 = arith.constant 0 : i32
    return %c0_i32, %c0_i32_0 : i32, i32
  }
  func.func @transform_3(%arg0: i32) -> (i32, i32, i32) {
    %c0_i32 = arith.constant 0 : i32
    %c0_i32_0 = arith.constant 0 : i32
    %c0_i32_1 = arith.constant 0 : i32
    return %arg0, %c0_i32, %c0_i32_0 : i32, i32, i32
  }
  func.func @transform_4(%arg0: i32) -> (i32, i32, i32) {
    %c0_i32 = arith.constant 0 : i32
    %0 = arith.subi %c0_i32, %arg0 : i32
    %c0_i32_0 = arith.constant 0 : i32
    %c0_i32_1 = arith.constant 0 : i32
    %c0_i32_2 = arith.constant 0 : i32
    return %0, %c0_i32_0, %c0_i32_1 : i32, i32, i32
  }
  func.func @transform_5(%arg0: i32) -> (i32, i32, i32) {
    %c0_i32 = arith.constant 0 : i32
    %c0_i32_0 = arith.constant 0 : i32
    %c0_i32_1 = arith.constant 0 : i32
    %c0_i32_2 = arith.constant 0 : i32
    return %c0_i32, %c0_i32_0, %c0_i32_1 : i32, i32, i32
  }
  func.func @transform_6(%arg0: i32) -> (i32, i32, i32) {
    %c0_i32 = arith.constant 0 : i32
    %c0_i32_0 = arith.constant 0 : i32
    %c0_i32_1 = arith.constant 0 : i32
    %c0_i32_2 = arith.constant 0 : i32
    return %c0_i32, %c0_i32_0, %c0_i32_1 : i32, i32, i32
  }
}

</mosaic_0001>

<llo_original>
// kernel: encoder_forward.2
$region0: #{encoder_forward.2}
  #allocation0 [shape = 'u32[]', space=smem, size = 0x4, offset = 0x4, fixed_abs, tag = 'smem constant byte address 0x4 - core index']
  #allocation1 [shape = 'u32[144,128]{1,0:T(1,128)}', space=vmem, size = 0x12000, scoped, tag = 'internal scratch']
  %s0 = inlined_call_operand.vmem [shape: f32[16,16], index: 0, kind: input, shape index: {}]
  %s1 = inlined_call_operand.vmem [shape: bf16[16,256], index: 1, kind: input, shape index: {}]
  %s2 = inlined_call_operand.vmem [shape: f32[1,256], index: 2, kind: input, shape index: {}]
  %s3 = inlined_call_operand.vmem [shape: f32[16,256], index: 3, kind: output, shape index: {}]
  %s4 = sld [smem:[#allocation0]]
  $region22: #{encoder_forward.2} parent=0
    _
  %s6 = ssub.s32 1, %s4
  %s7 = scalar_select 0, %s6, %s4
  // Predicated region
  $region2: #{encoder_forward.2} parent=0 // pred_check
    _
  $region3: #{encoder_forward.2} parent=0 // pred_check_branch
    %9 = sbr.rel (0) target = $region5
  $region4: #{encoder_forward.2} parent=0 // pred_region
    _
  $region5: #{encoder_forward.2} parent=0 // pred_fallthru
    _
  // Predicated region
  $region6: #{encoder_forward.2} parent=0 // pred_check
    _
  $region7: #{encoder_forward.2} parent=0 // pred_check_branch
    %11 = sbr.rel (0) target = $region9
  $region8: #{encoder_forward.2} parent=0 // pred_region
    _
  $region9: #{encoder_forward.2} parent=0 // pred_fallthru
    _
  // Predicated region
  $region10: #{encoder_forward.2} parent=0 // pred_check
    _
  $region11: #{encoder_forward.2} parent=0 // pred_check_branch
    %13 = sbr.rel (0) target = $region13
  $region12: #{encoder_forward.2} parent=0 // pred_region
    _
  $region13: #{encoder_forward.2} parent=0 // pred_fallthru
    _
  %v15 = vld [vmem:[%s0] sm:$0xff]
  %v16 = vld [vmem:[%s0 + $0x8] sm:$0xff]
  %v17 = vpack.c.bf16 %v16, %v15
  %v18 = vld [vmem:[%s1] sm:$0xff]
  %v19 = vld [vmem:[%s1 + $0x8] sm:$0xff]
  %v20 = vld [vmem:[%s2] sm:$0x3]
  %v22 = vlaneseq
  %v23 = vshrl.u32 %v22, 7
  %v24 = vsub.s32 0, %v23
  %v25 = vrot.slane %v20, %v24
  %v26 = vlaneseq
  %v27 = vshrl.u32 %v26, 7
  %v28 = vsub.s32 1, %v27
  %v29 = vrot.slane %v20, %v28
  %v34 = vunpack.c.l.b16 %v18
  %v35 = vunpack.c.h.b16 %v18
  %v36 = vunpack.c.l.b16 %v19
  %v37 = vunpack.c.h.b16 %v19
  %v38 = vpack.c.b16 %v36, %v34
  %v39 = vpack.c.b16 %v37, %v35
  %vm42 = vcmask 130048
  %v44 = vsel %vm42, %v17, 0
  %46 = vmatprep.subr.bf16.mxu0 %v39
  %47 = vmatpush1.bf16.msra.mxu0 %v38
  %48 = vmatprep.subr.bf16.mxu0 0
  %49 = vmatpush1.bf16.msra.mxu0 0
  %50 = vmatprep.subr.bf16.mxu0 0
  %51 = vmatpush1.bf16.msra.mxu0 0
  %52 = vmatprep.subr.bf16.mxu0 0
  %53 = vmatpush1.bf16.msra.mxu0 0
  %54 = vmatprep.subr.bf16.mxu0 0
  %55 = vmatpush1.bf16.msra.mxu0 0
  %56 = vmatprep.subr.bf16.mxu0 0
  %57 = vmatpush1.bf16.msra.mxu0 0
  %58 = vmatprep.subr.bf16.mxu0 0
  %59 = vmatpush1.bf16.msra.mxu0 0
  %60 = vmatprep.subr.bf16.mxu0 0
  %61 = vmatpush1.bf16.msra.mxu0 0
  %62 = vmatprep.subr.bf16.mxu0 0
  %63 = vmatpush1.bf16.msra.mxu0 0
  %64 = vmatprep.subr.bf16.mxu0 0
  %65 = vmatpush1.bf16.msra.mxu0 0
  %66 = vmatprep.subr.bf16.mxu0 0
  %67 = vmatpush1.bf16.msra.mxu0 0
  %68 = vmatprep.subr.bf16.mxu0 0
  %69 = vmatpush1.bf16.msra.mxu0 0
  %70 = vmatprep.subr.bf16.mxu0 0
  %71 = vmatpush1.bf16.msra.mxu0 0
  %72 = vmatprep.subr.bf16.mxu0 0
  %73 = vmatpush1.bf16.msra.mxu0 0
  %74 = vmatprep.subr.bf16.mxu0 0
  %75 = vmatpush1.bf16.msra.mxu0 0
  %76 = vmatprep.subr.bf16.mxu0 0
  %77 = vmatpush1.bf16.msra.mxu0 0
  %78 = vmatprep.mubr.bf16.mxu0 0
  %79 = vmatmul.mubr.bf16.gmra.mrb[0].mxu0 %v44
  %v80 = vpop.f32.mrb[0].mxu0
  %v81 = vadd.f32 %v25, %v80
  %v82 = vpop.f32.mrb[0].mxu0
  %v83 = vadd.f32 %v29, %v82
  %v84 = vpop.f32.mrb[0].mxu0
  %v85 = vadd.f32 %v25, %v84
  %v86 = vpop.f32.mrb[0].mxu0
  %v87 = vadd.f32 %v29, %v86
  %88 = vdwg.mxu0
  %89 = vst [vmem:[%s3] sm:$0xff] %v81
  %90 = vst [vmem:[%s3 + $0x8] sm:$0xff] %v83
  %91 = vst [vmem:[%s3 + $0x10] sm:$0xff] %v85
  %92 = vst [vmem:[%s3 + $0x18] sm:$0xff] %v87
  // Predicated region
  $region14: #{encoder_forward.2} parent=0 // pred_check
    _
  $region15: #{encoder_forward.2} parent=0 // pred_check_branch
    %94 = sbr.rel (0) target = $region17
  $region16: #{encoder_forward.2} parent=0 // pred_region
    _
  $region17: #{encoder_forward.2} parent=0 // pred_fallthru
    _
  // Predicated region
  $region18: #{encoder_forward.2} parent=0 // pred_check
    _
  $region19: #{encoder_forward.2} parent=0 // pred_check_branch
    %96 = sbr.rel (0) target = $region21
  $region20: #{encoder_forward.2} parent=0 // pred_region
    _
  $region21: #{encoder_forward.2} parent=0 // pred_fallthru
    _

// kernel: encoder_forward.3
$region0: #{encoder_forward.3}
  #allocation0 [shape = 'u32[]', space=smem, size = 0x4, offset = 0x4, fixed_abs, tag = 'smem constant byte address 0x4 - core index']
  #allocation1 [shape = 'u32[144,128]{1,0:T(1,128)}', space=vmem, size = 0x12000, scoped, tag = 'internal scratch']
  #allocation2 [shape = 'f32[2,64]{1,0:T(2,128)}', space=vmem, size = 0x400, scoped, tag = 'scratch operand']
  #allocation3 [shape = 'f32[2,32]{1,0:T(2,128)}', space=vmem, size = 0x400, scoped, tag = 'scratch operand']
  #allocation4 [shape = 'f32[2,32]{1,0:T(2,128)}', space=vmem, size = 0x400, scoped, tag = 'scratch operand']
  %s0 = inlined_call_operand.vmem [shape: f32[8,2,256], index: 0, kind: input, shape index: {}, may-alias: {0,1}]
  %s1 = inlined_call_operand.vmem [shape: f32[8,2,256], index: 1, kind: input, shape index: {}, may-alias: {0,1}]
  %s2 = inlined_call_operand.vmem [shape: bf16[64,256], index: 2, kind: input, shape index: {}]
  %s3 = inlined_call_operand.vmem [shape: f32[8,2,32], index: 3, kind: output, shape index: {0}]
  %s4 = inlined_call_operand.vmem [shape: f32[8,2,32], index: 4, kind: output, shape index: {1}]
  %s5 = inlined_call_operand.hbm [shape: f32[2,2,32], index: 5, kind: output, shape index: {2}]
  %s6 = inlined_call_operand.hbm [shape: f32[2,2,32], index: 6, kind: output, shape index: {3}]
  %7 = xla_tuple %s3, %s4, %s5, %s6
  %s8 = sld [smem:[#allocation0]]
  $region136: #{encoder_forward.3} parent=0
    _
  %s10 = ssub.s32 1, %s8
  %s11 = scalar_select 0, %s10, %s8
  $region1: #{encoder_forward.3} parent=0
    #allocation5 [shape = 'u8[8192]{0}', space=vmem, size = 0x2000, scoped, tag = 'input window, operand 0, single buffered']
    #allocation6 [shape = 'u8[8192]{0}', space=vmem, size = 0x2000, scoped, tag = 'input window, operand 1, single buffered']
    #allocation7 [shape = 'u8[2048]{0}', space=vmem, size = 0x800, scoped, tag = 'output window, operand 2, single buffered']
    #allocation8 [shape = 's32[1]{0}', space=sflag, size = 0x4, scoped, tag = 'scoped memory for encoder_forward.3']
    #allocation9 [shape = 'u8[2048]{0}', space=vmem, size = 0x800, scoped, tag = 'output window, operand 3, single buffered']
    #allocation10 [shape = 's32[1]{0}', space=sflag, size = 0x4, scoped, tag = 'scoped memory for encoder_forward.3']
    %12 = vsyncpa [#allocation8], 0
    %13 = vsyncpa [#allocation10], 0
    // Predicated region
    $region2: #{encoder_forward.3} parent=1 // pred_check
      _
    $region3: #{encoder_forward.3} parent=1 // pred_check_branch
      %15 = sbr.rel (0) target = $region5
    $region4: #{encoder_forward.3} parent=1 // pred_region
      // Predicated region
      $region6: #{encoder_forward.3} parent=4 // pred_check
        _
      $region7: #{encoder_forward.3} parent=4 // pred_check_branch
        %17 = sbr.rel (0) target = $region9
      $region8: #{encoder_forward.3} parent=4 // pred_region
        // Predicated region
        $region10: #{encoder_forward.3} parent=8 // pred_check
          _
        $region11: #{encoder_forward.3} parent=8 // pred_check_branch
          %19 = sbr.rel target = $region13
        $region12: #{encoder_forward.3} parent=8 // pred_region
          // Predicated region
          $region25: #{encoder_forward.3} parent=12 // pred_check
            _
          $region26: #{encoder_forward.3} parent=12 // pred_check_branch
            %48 = sbr.rel (0) target = $region28
          $region27: #{encoder_forward.3} parent=12 // pred_region
            loop: start=0, step=1, limit=1
            $region29: #{encoder_forward.3} parent=27 // loop_pre_header
              _
            $region30: #{encoder_forward.3} parent=27 // loop_header
              %s50 = sphi 0, %s54
              %p51 = scmp.ge.s32.totalorder %s50, 1
              %s55 = sphi %s0, %s0
              %s56 = sphi [#allocation5], [#allocation5]
            $region31: #{encoder_forward.3} parent=27 // loop_header_branch
              %53 = sbr.rel (%p51) target = $region35
            $region32: #{encoder_forward.3} parent=27 // loop_body
              _
            $region33: #{encoder_forward.3} parent=27 // loop_footer
              %s54 = sadd.s32 1, %s50
            $region34: #{encoder_forward.3} parent=27 // loop_footer_branch
              %49 = sbr.rel target = $region30
            $region35: #{encoder_forward.3} parent=27 // loop_exit
              _
            loop: start=0, step=1, limit=1
            $region36: #{encoder_forward.3} parent=27 // loop_pre_header
              _
            $region37: #{encoder_forward.3} parent=27 // loop_header
              %s59 = sphi 0, %s63
              %p60 = scmp.ge.s32.totalorder %s59, 1
              %s64 = sphi %s0, %s0
              %s65 = sphi [#allocation5], [#allocation5]
            $region38: #{encoder_forward.3} parent=27 // loop_header_branch
              %62 = sbr.rel (%p60) target = $region42
            $region39: #{encoder_forward.3} parent=27 // loop_body
              %v66 = vld [vmem:[%s64] sm:$0x3]
              %67 = vst [vmem:[%s65] sm:$0x3] %v66
              %v68 = vld [vmem:[%s64 + $0x4] sm:$0x3]
              %69 = vst [vmem:[%s65 + $0x2] sm:$0x3] %v68
              %v70 = vld [vmem:[%s64 + $0x8] sm:$0x3]
              %71 = vst [vmem:[%s65 + $0x4] sm:$0x3] %v70
              %v72 = vld [vmem:[%s64 + $0xc] sm:$0x3]
              %73 = vst [vmem:[%s65 + $0x6] sm:$0x3] %v72
              %v74 = vld [vmem:[%s64 + $0x10] sm:$0x3]
              %75 = vst [vmem:[%s65 + $0x8] sm:$0x3] %v74
              %v76 = vld [vmem:[%s64 + $0x14] sm:$0x3]
              %77 = vst [vmem:[%s65 + $0xa] sm:$0x3] %v76
              %v78 = vld [vmem:[%s64 + $0x18] sm:$0x3]
              %79 = vst [vmem:[%s65 + $0xc] sm:$0x3] %v78
              %v80 = vld [vmem:[%s64 + $0x1c] sm:$0x3]
              %81 = vst [vmem:[%s65 + $0xe] sm:$0x3] %v80
            $region40: #{encoder_forward.3} parent=27 // loop_footer
              %s63 = sadd.s32 1, %s59
            $region41: #{encoder_forward.3} parent=27 // loop_footer_branch
              %58 = sbr.rel target = $region37
            $region42: #{encoder_forward.3} parent=27 // loop_exit
              _
          $region28: #{encoder_forward.3} parent=12 // pred_fallthru
            _
        $region13: #{encoder_forward.3} parent=8 // pred_fallthru
          _
        // Predicated region
        $region14: #{encoder_forward.3} parent=8 // pred_check
          _
        $region15: #{encoder_forward.3} parent=8 // pred_check_branch
          %21 = sbr.rel (0) target = $region17
        $region16: #{encoder_forward.3} parent=8 // pred_region
          loop: start=0, step=1, limit=1
          $region18: #{encoder_forward.3} parent=16 // loop_pre_header
            _
          $region19: #{encoder_forward.3} parent=16 // loop_header
            %s24 = sphi 0, %s28
            %p25 = scmp.ge.s32.totalorder %s24, 1
            %s29 = sphi %s0, %s0
            %s30 = sphi [#allocation5], [#allocation5]
          $region20: #{encoder_forward.3} parent=16 // loop_header_branch
            %27 = sbr.rel (%p25) target = $region24
          $region21: #{encoder_forward.3} parent=16 // loop_body
            %v31 = vld [vmem:[%s29] sm:$0x3]
            %32 = vst [vmem:[%s30] sm:$0x3] %v31
            %v33 = vld [vmem:[%s29 + $0x4] sm:$0x3]
            %34 = vst [vmem:[%s30 + $0x2] sm:$0x3] %v33
            %v35 = vld [vmem:[%s29 + $0x8] sm:$0x3]
            %36 = vst [vmem:[%s30 + $0x4] sm:$0x3] %v35
            %v37 = vld [vmem:[%s29 + $0xc] sm:$0x3]
            %38 = vst [vmem:[%s30 + $0x6] sm:$0x3] %v37
            %v39 = vld [vmem:[%s29 + $0x10] sm:$0x3]
            %40 = vst [vmem:[%s30 + $0x8] sm:$0x3] %v39
            %v41 = vld [vmem:[%s29 + $0x14] sm:$0x3]
            %42 = vst [vmem:[%s30 + $0xa] sm:$0x3] %v41
            %v43 = vld [vmem:[%s29 + $0x18] sm:$0x3]
            %44 = vst [vmem:[%s30 + $0xc] sm:$0x3] %v43
            %v45 = vld [vmem:[%s29 + $0x1c] sm:$0x3]
            %46 = vst [vmem:[%s30 + $0xe] sm:$0x3] %v45
          $region22: #{encoder_forward.3} parent=16 // loop_footer
            %s28 = sadd.s32 1, %s24
          $region23: #{encoder_forward.3} parent=16 // loop_footer_branch
            %23 = sbr.rel target = $region19
          $region24: #{encoder_forward.3} parent=16 // loop_exit
            _
        $region17: #{encoder_forward.3} parent=8 // pred_fallthru
          _
      $region9: #{encoder_forward.3} parent=4 // pred_fallthru
        _
      %82 = vnop
    $region5: #{encoder_forward.3} parent=1 // pred_fallthru
      _
    // Predicated region
    $region43: #{encoder_forward.3} parent=1 // pred_check
      _
    $region44: #{encoder_forward.3} parent=1 // pred_check_branch
      %84 = sbr.rel (0) target = $region46
    $region45: #{encoder_forward.3} parent=1 // pred_region
      %s85 = ssub.s32 0, 0
      %s86 = smul.u32 8, %s85
      %s87 = smul.addr %s86, 2
      %s88 = sadd.s32 1, %s87
      %s89 = smul.addr %s88, 2
      %s90 = scalar_lea.vmem %s1, %s89
      // Predicated region
      $region47: #{encoder_forward.3} parent=45 // pred_check
        _
      $region48: #{encoder_forward.3} parent=45 // pred_check_branch
        %92 = sbr.rel (0) target = $region50
      $region49: #{encoder_forward.3} parent=45 // pred_region
        // Predicated region
        $region51: #{encoder_forward.3} parent=49 // pred_check
          _
        $region52: #{encoder_forward.3} parent=49 // pred_check_branch
          %94 = sbr.rel target = $region54
        $region53: #{encoder_forward.3} parent=49 // pred_region
          // Predicated region
          $region66: #{encoder_forward.3} parent=53 // pred_check
            _
          $region67: #{encoder_forward.3} parent=53 // pred_check_branch
            %123 = sbr.rel (0) target = $region69
          $region68: #{encoder_forward.3} parent=53 // pred_region
            loop: start=0, step=1, limit=1
            $region70: #{encoder_forward.3} parent=68 // loop_pre_header
              _
            $region71: #{encoder_forward.3} parent=68 // loop_header
              %s125 = sphi 0, %s129
              %p126 = scmp.ge.s32.totalorder %s125, 1
              %s130 = sphi %s90, %s90
              %s131 = sphi [#allocation6], [#allocation6]
            $region72: #{encoder_forward.3} parent=68 // loop_header_branch
              %128 = sbr.rel (%p126) target = $region76
            $region73: #{encoder_forward.3} parent=68 // loop_body
              _
            $region74: #{encoder_forward.3} parent=68 // loop_footer
              %s129 = sadd.s32 1, %s125
            $region75: #{encoder_forward.3} parent=68 // loop_footer_branch
              %124 = sbr.rel target = $region71
            $region76: #{encoder_forward.3} parent=68 // loop_exit
              _
            loop: start=0, step=1, limit=1
            $region77: #{encoder_forward.3} parent=68 // loop_pre_header
              _
            $region78: #{encoder_forward.3} parent=68 // loop_header
              %s134 = sphi 0, %s138
              %p135 = scmp.ge.s32.totalorder %s134, 1
              %s139 = sphi %s90, %s90
              %s140 = sphi [#allocation6], [#allocation6]
            $region79: #{encoder_forward.3} parent=68 // loop_header_branch
              %137 = sbr.rel (%p135) target = $region83
            $region80: #{encoder_forward.3} parent=68 // loop_body
              %v141 = vld [vmem:[%s139] sm:$0x3]
              %142 = vst [vmem:[%s140] sm:$0x3] %v141
              %v143 = vld [vmem:[%s139 + $0x4] sm:$0x3]
              %144 = vst [vmem:[%s140 + $0x2] sm:$0x3] %v143
              %v145 = vld [vmem:[%s139 + $0x8] sm:$0x3]
              %146 = vst [vmem:[%s140 + $0x4] sm:$0x3] %v145
              %v147 = vld [vmem:[%s139 + $0xc] sm:$0x3]
              %148 = vst [vmem:[%s140 + $0x6] sm:$0x3] %v147
              %v149 = vld [vmem:[%s139 + $0x10] sm:$0x3]
              %150 = vst [vmem:[%s140 + $0x8] sm:$0x3] %v149
              %v151 = vld [vmem:[%s139 + $0x14] sm:$0x3]
              %152 = vst [vmem:[%s140 + $0xa] sm:$0x3] %v151
              %v153 = vld [vmem:[%s139 + $0x18] sm:$0x3]
              %154 = vst [vmem:[%s140 + $0xc] sm:$0x3] %v153
              %v155 = vld [vmem:[%s139 + $0x1c] sm:$0x3]
              %156 = vst [vmem:[%s140 + $0xe] sm:$0x3] %v155
            $region81: #{encoder_forward.3} parent=68 // loop_footer
              %s138 = sadd.s32 1, %s134
            $region82: #{encoder_forward.3} parent=68 // loop_footer_branch
              %133 = sbr.rel target = $region78
            $region83: #{encoder_forward.3} parent=68 // loop_exit
              _
          $region69: #{encoder_forward.3} parent=53 // pred_fallthru
            _
        $region54: #{encoder_forward.3} parent=49 // pred_fallthru
          _
        // Predicated region
        $region55: #{encoder_forward.3} parent=49 // pred_check
          _
        $region56: #{encoder_forward.3} parent=49 // pred_check_branch
          %96 = sbr.rel (0) target = $region58
        $region57: #{encoder_forward.3} parent=49 // pred_region
          loop: start=0, step=1, limit=1
          $region59: #{encoder_forward.3} parent=57 // loop_pre_header
            _
          $region60: #{encoder_forward.3} parent=57 // loop_header
            %s99 = sphi 0, %s103
            %p100 = scmp.ge.s32.totalorder %s99, 1
            %s104 = sphi %s90, %s90
            %s105 = sphi [#allocation6], [#allocation6]
          $region61: #{encoder_forward.3} parent=57 // loop_header_branch
            %102 = sbr.rel (%p100) target = $region65
          $region62: #{encoder_forward.3} parent=57 // loop_body
            %v106 = vld [vmem:[%s104] sm:$0x3]
            %107 = vst [vmem:[%s105] sm:$0x3] %v106
            %v108 = vld [vmem:[%s104 + $0x4] sm:$0x3]
            %109 = vst [vmem:[%s105 + $0x2] sm:$0x3] %v108
            %v110 = vld [vmem:[%s104 + $0x8] sm:$0x3]
            %111 = vst [vmem:[%s105 + $0x4] sm:$0x3] %v110
            %v112 = vld [vmem:[%s104 + $0xc] sm:$0x3]
            %113 = vst [vmem:[%s105 + $0x6] sm:$0x3] %v112
            %v114 = vld [vmem:[%s104 + $0x10] sm:$0x3]
            %115 = vst [vmem:[%s105 + $0x8] sm:$0x3] %v114
            %v116 = vld [vmem:[%s104 + $0x14] sm:$0x3]
            %117 = vst [vmem:[%s105 + $0xa] sm:$0x3] %v116
            %v118 = vld [vmem:[%s104 + $0x18] sm:$0x3]
            %119 = vst [vmem:[%s105 + $0xc] sm:$0x3] %v118
            %v120 = vld [vmem:[%s104 + $0x1c] sm:$0x3]
            %121 = vst [vmem:[%s105 + $0xe] sm:$0x3] %v120
          $region63: #{encoder_forward.3} parent=57 // loop_footer
            %s103 = sadd.s32 1, %s99
          $region64: #{encoder_forward.3} parent=57 // loop_footer_branch
            %98 = sbr.rel target = $region60
          $region65: #{encoder_forward.3} parent=57 // loop_exit
            _
        $region58: #{encoder_forward.3} parent=49 // pred_fallthru
          _
      $region50: #{encoder_forward.3} parent=45 // pred_fallthru
        _
      %157 = vnop
    $region46: #{encoder_forward.3} parent=1 // pred_fallthru
      _
    // Predicated region
    $region84: #{encoder_forward.3} parent=1 // pred_check
      _
    $region85: #{encoder_forward.3} parent=1 // pred_check_branch
      %159 = sbr.rel (0) target = $region87
    $region86: #{encoder_forward.3} parent=1 // pred_region
      _
    $region87: #{encoder_forward.3} parent=1 // pred_fallthru
      _
    // Predicated region
    $region88: #{encoder_forward.3} parent=1 // pred_check
      _
    $region89: #{encoder_forward.3} parent=1 // pred_check_branch
      %161 = sbr.rel (0) target = $region91
    $region90: #{encoder_forward.3} parent=1 // pred_region
      _
    $region91: #{encoder_forward.3} parent=1 // pred_fallthru
      _
    // Predicated region
    $region92: #{encoder_forward.3} parent=1 // pred_check
      _
    $region93: #{encoder_forward.3} parent=1 // pred_check_branch
      %163 = sbr.rel (0) target = $region95
    $region94: #{encoder_forward.3} parent=1 // pred_region
      _
    $region95: #{encoder_forward.3} parent=1 // pred_fallthru
      _
    %s164 = ssub.s32 0, 0
    %s165 = smul.u32 8, %s164
    %p166 = scmp.lt.s32.totalorder %s165, 7
    %s167 = scalar_select %p166, %s165, 7
    %s168 = smul.addr %s167, 2
    %s169 = scalar_lea.vmem %s4, %s168
    %s170 = ssub.s32 0, 0
    %s171 = smul.u32 8, %s170
    %s172 = ssub.s32 0, 0
    %s173 = smul.u32 8, %s172
    %p174 = scmp.lt.s32.totalorder %s173, 7
    %s175 = scalar_select %p174, %s173, 7
    %s176 = smul.addr %s175, 2
    %s177 = scalar_lea.vmem %s4, %s176
    %s178 = ssub.s32 0, 0
    %s179 = smul.u32 8, %s178
    %p181 = scmp.eq.s32.totalorder 0, 0
    // Predicated region
    $region96: #{encoder_forward.3} parent=1 // pred_check
      %p182 = pneg %p181
    $region97: #{encoder_forward.3} parent=1 // pred_check_branch
      %184 = sbr.rel (%p182) target = $region99
    $region98: #{encoder_forward.3} parent=1 // pred_region
      %vm185 = vcmask 517120
      %186 = vst.msk [vmem:[#allocation2] sm:$0x3] %vm185, 0.0
      %vm187 = vcmask 254976
      %188 = vst.msk [vmem:[#allocation3] sm:$0x3] %vm187, 0.0
      %189 = vst.msk [vmem:[#allocation4] sm:$0x3] %vm187, 0.0
    $region99: #{encoder_forward.3} parent=1 // pred_fallthru
      _
    %v190 = vld [vmem:[%s2] sm:$0xff]
    %v191 = vld [vmem:[%s2 + $0x8] sm:$0xff]
    %v192 = vld [vmem:[%s2 + $0x10] sm:$0xff]
    %v193 = vld [vmem:[%s2 + $0x18] sm:$0xff]
    %v194 = vld [vmem:[%s2 + $0x20] sm:$0xff]
    %v195 = vld [vmem:[%s2 + $0x28] sm:$0xff]
    %v196 = vld [vmem:[%s2 + $0x30] sm:$0xff]
    %v197 = vld [vmem:[%s2 + $0x38] sm:$0xff]
    %v198 = vld [vmem:[#allocation2] sm:$0x3]
    %v199 = vld [vmem:[#allocation3] sm:$0x3]
    %v200 = vld [vmem:[#allocation4] sm:$0x3]
    %v201 = vpack.c.bf16 %v198, %v198
    %v210 = vunpack.c.l.b16 %v190
    %v211 = vunpack.c.h.b16 %v190
    %v212 = vunpack.c.l.b16 %v191
    %v213 = vunpack.c.h.b16 %v191
    %v214 = vunpack.c.l.b16 %v192
    %v215 = vunpack.c.h.b16 %v192
    %v216 = vunpack.c.l.b16 %v193
    %v217 = vunpack.c.h.b16 %v193
    %v218 = vunpack.c.l.b16 %v194
    %v219 = vunpack.c.h.b16 %v194
    %v220 = vunpack.c.l.b16 %v195
    %v221 = vunpack.c.h.b16 %v195
    %v222 = vunpack.c.l.b16 %v196
    %v223 = vunpack.c.h.b16 %v196
    %v224 = vunpack.c.l.b16 %v197
    %v225 = vunpack.c.h.b16 %v197
    %v226 = vpack.c.b16 %v212, %v210
    %v227 = vpack.c.b16 %v213, %v211
    %v228 = vpack.c.b16 %v216, %v214
    %v229 = vpack.c.b16 %v217, %v215
    %v230 = vpack.c.b16 %v220, %v218
    %v231 = vpack.c.b16 %v221, %v219
    %v232 = vpack.c.b16 %v224, %v222
    %v233 = vpack.c.b16 %v225, %v223
    %vm242 = vcmask 523264
    %v244 = vsel %vm242, %v201, 0
    %246 = vmatprep.subr.bf16.mxu0 %v227
    %247 = vmatpush1.bf16.msra.mxu0 %v226
    %248 = vmatprep.subr.bf16.mxu0 %v229
    %249 = vmatpush1.bf16.msra.mxu0 %v228
    %250 = vmatprep.subr.bf16.mxu0 %v231
    %251 = vmatpush1.bf16.msra.mxu0 %v230
    %252 = vmatprep.subr.bf16.mxu0 %v233
    %253 = vmatpush1.bf16.msra.mxu0 %v232
    %254 = vmatprep.subr.bf16.mxu0 0
    %255 = vmatpush1.bf16.msra.mxu0 0
    %256 = vmatprep.subr.bf16.mxu0 0
    %257 = vmatpush1.bf16.msra.mxu0 0
    %258 = vmatprep.subr.bf16.mxu0 0
    %259 = vmatpush1.bf16.msra.mxu0 0
    %260 = vmatprep.subr.bf16.mxu0 0
    %261 = vmatpush1.bf16.msra.mxu0 0
    %262 = vmatprep.subr.bf16.mxu0 0
    %263 = vmatpush1.bf16.msra.mxu0 0
    %264 = vmatprep.subr.bf16.mxu0 0
    %265 = vmatpush1.bf16.msra.mxu0 0
    %266 = vmatprep.subr.bf16.mxu0 0
    %267 = vmatpush1.bf16.msra.mxu0 0
    %268 = vmatprep.subr.bf16.mxu0 0
    %269 = vmatpush1.bf16.msra.mxu0 0
    %270 = vmatprep.subr.bf16.mxu0 0
    %271 = vmatpush1.bf16.msra.mxu0 0
    %272 = vmatprep.subr.bf16.mxu0 0
    %273 = vmatpush1.bf16.msra.mxu0 0
    %274 = vmatprep.subr.bf16.mxu0 0
    %275 = vmatpush1.bf16.msra.mxu0 0
    %276 = vmatprep.subr.bf16.mxu0 0
    %277 = vmatpush1.bf16.msra.mxu0 0
    %278 = vmatprep.mubr.bf16.mxu0 0
    %279 = vmatmul.mubr.bf16.gmra.mrb[0].mxu0 %v244
    %v280 = vpop.f32.mrb[0].mxu0
    %v281 = vadd.f32 0.0, %v280
    %v282 = vpop.f32.mrb[0].mxu0
    %v283 = vadd.f32 0.0, %v282
    %v284 = vpop.f32.mrb[0].mxu0
    %v285 = vpop.f32.mrb[0].mxu0
    %286 = vdwg.mxu0
    %v287 = vld [vmem:[#allocation5] sm:$0x3]
    %v288 = vadd.f32 %v287, %v281
    %s289 = scalar_lea.vmem [#allocation6], 14
    %v290 = vld [vmem:[%s289] sm:$0x3]
    %v291 = vadd.f32 %v290, %v283
    %v292 = vxor.u32 %v288, 2147483648
    %v293 = vmul.f32 %v292, 1.442695
    %v294 = vpow.pop %v293
    %v295 = vadd.f32 %v294, 1.0
    %v296 = vrcp.pop %v295
    %v297 = vmul.f32 1.0, %v296
    %v298 = vtanh.pop %v288
    %300 = vrot.lane.b32.xlu0 %v199, 32
    %v301 = vpop.permute.xlu0 %300
    %v303 = vmul.f32 %v297, %v301
    %305 = vrot.lane.b32.xlu0 %v298, 32
    %v306 = vpop.permute.xlu0 %305
    %v308 = vmul.f32 %v297, %v306
    %310 = vrot.lane.b32.xlu0 %v308, 32
    %v311 = vpop.permute.xlu0 %310
    %v313 = vadd.f32 %v303, %v311
    %v314 = vtanh.pop %v313
    %316 = vrot.lane.b32.xlu0 %v314, 32
    %v317 = vpop.permute.xlu0 %316
    %v319 = vmul.f32 %v297, %v317
    %v320 = vxor.u32 %v291, 2147483648
    %v321 = vmul.f32 %v320, 1.442695
    %v322 = vpow.pop %v321
    %v323 = vadd.f32 %v322, 1.0
    %v324 = vrcp.pop %v323
    %v325 = vmul.f32 1.0, %v324
    %v326 = vtanh.pop %v291
    %328 = vrot.lane.b32.xlu0 %v200, 32
    %v329 = vpop.permute.xlu0 %328
    %v331 = vmul.f32 %v325, %v329
    %333 = vrot.lane.b32.xlu0 %v326, 32
    %v334 = vpop.permute.xlu0 %333
    %v336 = vmul.f32 %v325, %v334
    %338 = vrot.lane.b32.xlu0 %v336, 32
    %v339 = vpop.permute.xlu0 %338
    %v341 = vadd.f32 %v331, %v339
    %v342 = vtanh.pop %v341
    %344 = vrot.lane.b32.xlu0 %v342, 32
    %v345 = vpop.permute.xlu0 %344
    %v347 = vmul.f32 %v325, %v345
    %349 = vrot.lane.b32.xlu0 %v319, 64
    %v350 = vpop.permute.xlu0 %349
    %353 = vrot.lane.b32.xlu0 %v347, 96
    %v354 = vpop.permute.xlu0 %353
    %vm356 = vcmask 261120
    %v357 = vsel %vm356, %v350, %v354
    %vm358 = vcmask 254976
    %359 = vst.msk [vmem:[%s3] sm:$0x3] %vm358, %v350
    %360 = vrot.lane.b32.xlu0 %v347, 64
    %v361 = vpop.permute.xlu0 %360
    %s363 = scalar_lea.vmem %s177, 14
    %364 = vst.msk [vmem:[%s363] sm:$0x3] %vm358, %v361
    %v365 = vpack.c.bf16 %v357, %v357
    %v367 = vsel %vm242, %v365, 0
    %369 = vmatprep.subr.bf16.mxu0 %v227
    %370 = vmatpush1.bf16.msra.mxu0 %v226
    %371 = vmatprep.subr.bf16.mxu0 %v229
    %372 = vmatpush1.bf16.msra.mxu0 %v228
    %373 = vmatprep.subr.bf16.mxu0 %v231
    %374 = vmatpush1.bf16.msra.mxu0 %v230
    %375 = vmatprep.subr.bf16.mxu0 %v233
    %376 = vmatpush1.bf16.msra.mxu0 %v232
    %377 = vmatprep.subr.bf16.mxu0 0
    %378 = vmatpush1.bf16.msra.mxu0 0
    %379 = vmatprep.subr.bf16.mxu0 0
    %380 = vmatpush1.bf16.msra.mxu0 0
    %381 = vmatprep.subr.bf16.mxu0 0
    %382 = vmatpush1.bf16.msra.mxu0 0
    %383 = vmatprep.subr.bf16.mxu0 0
    %384 = vmatpush1.bf16.msra.mxu0 0
    %385 = vmatprep.subr.bf16.mxu0 0
    %386 = vmatpush1.bf16.msra.mxu0 0
    %387 = vmatprep.subr.bf16.mxu0 0
    %388 = vmatpush1.bf16.msra.mxu0 0
    %389 = vmatprep.subr.bf16.mxu0 0
    %390 = vmatpush1.bf16.msra.mxu0 0
    %391 = vmatprep.subr.bf16.mxu0 0
    %392 = vmatpush1.bf16.msra.mxu0 0
    %393 = vmatprep.subr.bf16.mxu0 0
    %394 = vmatpush1.bf16.msra.mxu0 0
    %395 = vmatprep.subr.bf16.mxu0 0
    %396 = vmatpush1.bf16.msra.mxu0 0
    %397 = vmatprep.subr.bf16.mxu0 0
    %398 = vmatpush1.bf16.msra.mxu0 0
    %399 = vmatprep.subr.bf16.mxu0 0
    %400 = vmatpush1.bf16.msra.mxu0 0
    %401 = vmatprep.mubr.bf16.mxu0 0
    %402 = vmatmul.mubr.bf16.gmra.mrb[0].mxu0 %v367
    %v403 = vpop.f32.mrb[0].mxu0
    %v404 = vadd.f32 0.0, %v403
    %v405 = vpop.f32.mrb[0].mxu0
    %v406 = vadd.f32 0.0, %v405
    %v407 = vpop.f32.mrb[0].mxu0
    %v408 = vpop.f32.mrb[0].mxu0
    %409 = vdwg.mxu0
    %s410 = scalar_lea.vmem [#allocation5], 2
    %v411 = vld [vmem:[%s410] sm:$0x3]
    %v412 = vadd.f32 %v411, %v404
    %s413 = scalar_lea.vmem [#allocation6], 12
    %v414 = vld [vmem:[%s413] sm:$0x3]
    %v415 = vadd.f32 %v414, %v406
    %v416 = vxor.u32 %v412, 2147483648
    %v417 = vmul.f32 %v416, 1.442695
    %v418 = vpow.pop %v417
    %v419 = vadd.f32 %v418, 1.0
    %v420 = vrcp.pop %v419
    %v421 = vmul.f32 1.0, %v420
    %v422 = vtanh.pop %v412
    %v423 = vmul.f32 %v421, %v313
    %425 = vrot.lane.b32.xlu0 %v422, 32
    %v426 = vpop.permute.xlu0 %425
    %v428 = vmul.f32 %v421, %v426
    %430 = vrot.lane.b32.xlu0 %v428, 32
    %v431 = vpop.permute.xlu0 %430
    %v433 = vadd.f32 %v423, %v431
    %v434 = vtanh.pop %v433
    %436 = vrot.lane.b32.xlu0 %v434, 32
    %v437 = vpop.permute.xlu0 %436
    %v439 = vmul.f32 %v421, %v437
    %v440 = vxor.u32 %v415, 2147483648
    %v441 = vmul.f32 %v440, 1.442695
    %v442 = vpow.pop %v441
    %v443 = vadd.f32 %v442, 1.0
    %v444 = vrcp.pop %v443
    %v445 = vmul.f32 1.0, %v444
    %v446 = vtanh.pop %v415
    %v447 = vmul.f32 %v445, %v341
    %449 = vrot.lane.b32.xlu0 %v446, 32
    %v450 = vpop.permute.xlu0 %449
    %v452 = vmul.f32 %v445, %v450
    %454 = vrot.lane.b32.xlu0 %v452, 32
    %v455 = vpop.permute.xlu0 %454
    %v457 = vadd.f32 %v447, %v455
    %v458 = vtanh.pop %v457
    %460 = vrot.lane.b32.xlu0 %v458, 32
    %v461 = vpop.permute.xlu0 %460
    %v463 = vmul.f32 %v445, %v461
    %465 = vrot.lane.b32.xlu0 %v439, 64
    %v466 = vpop.permute.xlu0 %465
    %469 = vrot.lane.b32.xlu0 %v463, 96
    %v470 = vpop.permute.xlu0 %469
    %v472 = vsel %vm356, %v466, %v470
    %s473 = scalar_lea.vmem %s3, 2
    %474 = vst.msk [vmem:[%s473] sm:$0x3] %vm358, %v466
    %475 = vrot.lane.b32.xlu0 %v463, 64
    %v476 = vpop.permute.xlu0 %475
    %s478 = scalar_lea.vmem %s177, 12
    %479 = vst.msk [vmem:[%s478] sm:$0x3] %vm358, %v476
    %v480 = vpack.c.bf16 %v472, %v472
    %v482 = vsel %vm242, %v480, 0
    %484 = vmatprep.subr.bf16.mxu0 %v227
    %485 = vmatpush1.bf16.msra.mxu0 %v226
    %486 = vmatprep.subr.bf16.mxu0 %v229
    %487 = vmatpush1.bf16.msra.mxu0 %v228
    %488 = vmatprep.subr.bf16.mxu0 %v231
    %489 = vmatpush1.bf16.msra.mxu0 %v230
    %490 = vmatprep.subr.bf16.mxu0 %v233
    %491 = vmatpush1.bf16.msra.mxu0 %v232
    %492 = vmatprep.subr.bf16.mxu0 0
    %493 = vmatpush1.bf16.msra.mxu0 0
    %494 = vmatprep.subr.bf16.mxu0 0
    %495 = vmatpush1.bf16.msra.mxu0 0
    %496 = vmatprep.subr.bf16.mxu0 0
    %497 = vmatpush1.bf16.msra.mxu0 0
    %498 = vmatprep.subr.bf16.mxu0 0
    %499 = vmatpush1.bf16.msra.mxu0 0
    %500 = vmatprep.subr.bf16.mxu0 0
    %501 = vmatpush1.bf16.msra.mxu0 0
    %502 = vmatprep.subr.bf16.mxu0 0
    %503 = vmatpush1.bf16.msra.mxu0 0
    %504 = vmatprep.subr.bf16.mxu0 0
    %505 = vmatpush1.bf16.msra.mxu0 0
    %506 = vmatprep.subr.bf16.mxu0 0
    %507 = vmatpush1.bf16.msra.mxu0 0
    %508 = vmatprep.subr.bf16.mxu0 0
    %509 = vmatpush1.bf16.msra.mxu0 0
    %510 = vmatprep.subr.bf16.mxu0 0
    %511 = vmatpush1.bf16.msra.mxu0 0
    %512 = vmatprep.subr.bf16.mxu0 0
    %513 = vmatpush1.bf16.msra.mxu0 0
    %514 = vmatprep.subr.bf16.mxu0 0
    %515 = vmatpush1.bf16.msra.mxu0 0
    %516 = vmatprep.mubr.bf16.mxu0 0
    %517 = vmatmul.mubr.bf16.gmra.mrb[0].mxu0 %v482
    %v518 = vpop.f32.mrb[0].mxu0
    %v519 = vadd.f32 0.0, %v518
    %v520 = vpop.f32.mrb[0].mxu0
    %v521 = vadd.f32 0.0, %v520
    %v522 = vpop.f32.mrb[0].mxu0
    %v523 = vpop.f32.mrb[0].mxu0
    %524 = vdwg.mxu0
    %s525 = scalar_lea.vmem [#allocation5], 4
    %v526 = vld [vmem:[%s525] sm:$0x3]
    %v527 = vadd.f32 %v526, %v519
    %s528 = scalar_lea.vmem [#allocation6], 10
    %v529 = vld [vmem:[%s528] sm:$0x3]
    %v530 = vadd.f32 %v529, %v521
    %v531 = vxor.u32 %v527, 2147483648
    %v532 = vmul.f32 %v531, 1.442695
    %v533 = vpow.pop %v532
    %v534 = vadd.f32 %v533, 1.0
    %v535 = vrcp.pop %v534
    %v536 = vmul.f32 1.0, %v535
    %v537 = vtanh.pop %v527
    %v538 = vmul.f32 %v536, %v433
    %540 = vrot.lane.b32.xlu0 %v537, 32
    %v541 = vpop.permute.xlu0 %540
    %v543 = vmul.f32 %v536, %v541
    %545 = vrot.lane.b32.xlu0 %v543, 32
    %v546 = vpop.permute.xlu0 %545
    %v548 = vadd.f32 %v538, %v546
    %v549 = vtanh.pop %v548
    %551 = vrot.lane.b32.xlu0 %v549, 32
    %v552 = vpop.permute.xlu0 %551
    %v554 = vmul.f32 %v536, %v552
    %v555 = vxor.u32 %v530, 2147483648
    %v556 = vmul.f32 %v555, 1.442695
    %v557 = vpow.pop %v556
    %v558 = vadd.f32 %v557, 1.0
    %v559 = vrcp.pop %v558
    %v560 = vmul.f32 1.0, %v559
    %v561 = vtanh.pop %v530
    %v562 = vmul.f32 %v560, %v457
    %564 = vrot.lane.b32.xlu0 %v561, 32
    %v565 = vpop.permute.xlu0 %564
    %v567 = vmul.f32 %v560, %v565
    %569 = vrot.lane.b32.xlu0 %v567, 32
    %v570 = vpop.permute.xlu0 %569
    %v572 = vadd.f32 %v562, %v570
    %v573 = vtanh.pop %v572
    %575 = vrot.lane.b32.xlu0 %v573, 32
    %v576 = vpop.permute.xlu0 %575
    %v578 = vmul.f32 %v560, %v576
    %580 = vrot.lane.b32.xlu0 %v554, 64
    %v581 = vpop.permute.xlu0 %580
    %584 = vrot.lane.b32.xlu0 %v578, 96
    %v585 = vpop.permute.xlu0 %584
    %v587 = vsel %vm356, %v581, %v585
    %s588 = scalar_lea.vmem %s3, 4
    %589 = vst.msk [vmem:[%s588] sm:$0x3] %vm358, %v581
    %590 = vrot.lane.b32.xlu0 %v578, 64
    %v591 = vpop.permute.xlu0 %590
    %s593 = scalar_lea.vmem %s177, 10
    %594 = vst.msk [vmem:[%s593] sm:$0x3] %vm358, %v591
    %v595 = vpack.c.bf16 %v587, %v587
    %v597 = vsel %vm242, %v595, 0
    %599 = vmatprep.subr.bf16.mxu0 %v227
    %600 = vmatpush1.bf16.msra.mxu0 %v226
    %601 = vmatprep.subr.bf16.mxu0 %v229
    %602 = vmatpush1.bf16.msra.mxu0 %v228
    %603 = vmatprep.subr.bf16.mxu0 %v231
    %604 = vmatpush1.bf16.msra.mxu0 %v230
    %605 = vmatprep.subr.bf16.mxu0 %v233
    %606 = vmatpush1.bf16.msra.mxu0 %v232
    %607 = vmatprep.subr.bf16.mxu0 0
    %608 = vmatpush1.bf16.msra.mxu0 0
    %609 = vmatprep.subr.bf16.mxu0 0
    %610 = vmatpush1.bf16.msra.mxu0 0
    %611 = vmatprep.subr.bf16.mxu0 0
    %612 = vmatpush1.bf16.msra.mxu0 0
    %613 = vmatprep.subr.bf16.mxu0 0
    %614 = vmatpush1.bf16.msra.mxu0 0
    %615 = vmatprep.subr.bf16.mxu0 0
    %616 = vmatpush1.bf16.msra.mxu0 0
    %617 = vmatprep.subr.bf16.mxu0 0
    %618 = vmatpush1.bf16.msra.mxu0 0
    %619 = vmatprep.subr.bf16.mxu0 0
    %620 = vmatpush1.bf16.msra.mxu0 0
    %621 = vmatprep.subr.bf16.mxu0 0
    %622 = vmatpush1.bf16.msra.mxu0 0
    %623 = vmatprep.subr.bf16.mxu0 0
    %624 = vmatpush1.bf16.msra.mxu0 0
    %625 = vmatprep.subr.bf16.mxu0 0
    %626 = vmatpush1.bf16.msra.mxu0 0
    %627 = vmatprep.subr.bf16.mxu0 0
    %628 = vmatpush1.bf16.msra.mxu0 0
    %629 = vmatprep.subr.bf16.mxu0 0
    %630 = vmatpush1.bf16.msra.mxu0 0
    %631 = vmatprep.mubr.bf16.mxu0 0
    %632 = vmatmul.mubr.bf16.gmra.mrb[0].mxu0 %v597
    %v633 = vpop.f32.mrb[0].mxu0
    %v634 = vadd.f32 0.0, %v633
    %v635 = vpop.f32.mrb[0].mxu0
    %v636 = vadd.f32 0.0, %v635
    %v637 = vpop.f32.mrb[0].mxu0
    %v638 = vpop.f32.mrb[0].mxu0
    %639 = vdwg.mxu0
    %s640 = scalar_lea.vmem [#allocation5], 6
    %v641 = vld [vmem:[%s640] sm:$0x3]
    %v642 = vadd.f32 %v641, %v634
    %s643 = scalar_lea.vmem [#allocation6], 8
    %v644 = vld [vmem:[%s643] sm:$0x3]
    %v645 = vadd.f32 %v644, %v636
    %v646 = vxor.u32 %v642, 2147483648
    %v647 = vmul.f32 %v646, 1.442695
    %v648 = vpow.pop %v647
    %v649 = vadd.f32 %v648, 1.0
    %v650 = vrcp.pop %v649
    %v651 = vmul.f32 1.0, %v650
    %v652 = vtanh.pop %v642
    %v653 = vmul.f32 %v651, %v548
    %655 = vrot.lane.b32.xlu0 %v652, 32
    %v656 = vpop.permute.xlu0 %655
    %v658 = vmul.f32 %v651, %v656
    %660 = vrot.lane.b32.xlu0 %v658, 32
    %v661 = vpop.permute.xlu0 %660
    %v663 = vadd.f32 %v653, %v661
    %v664 = vtanh.pop %v663
    %666 = vrot.lane.b32.xlu0 %v664, 32
    %v667 = vpop.permute.xlu0 %666
    %v669 = vmul.f32 %v651, %v667
    %v670 = vxor.u32 %v645, 2147483648
    %v671 = vmul.f32 %v670, 1.442695
    %v672 = vpow.pop %v671
    %v673 = vadd.f32 %v672, 1.0
    %v674 = vrcp.pop %v673
    %v675 = vmul.f32 1.0, %v674
    %v676 = vtanh.pop %v645
    %v677 = vmul.f32 %v675, %v572
    %679 = vrot.lane.b32.xlu0 %v676, 32
    %v680 = vpop.permute.xlu0 %679
    %v682 = vmul.f32 %v675, %v680
    %684 = vrot.lane.b32.xlu0 %v682, 32
    %v685 = vpop.permute.xlu0 %684
    %v687 = vadd.f32 %v677, %v685
    %v688 = vtanh.pop %v687
    %690 = vrot.lane.b32.xlu0 %v688, 32
    %v691 = vpop.permute.xlu0 %690
    %v693 = vmul.f32 %v675, %v691
    %695 = vrot.lane.b32.xlu0 %v669, 64
    %v696 = vpop.permute.xlu0 %695
    %699 = vrot.lane.b32.xlu0 %v693, 96
    %v700 = vpop.permute.xlu0 %699
    %v702 = vsel %vm356, %v696, %v700
    %s703 = scalar_lea.vmem %s3, 6
    %704 = vst.msk [vmem:[%s703] sm:$0x3] %vm358, %v696
    %705 = vrot.lane.b32.xlu0 %v693, 64
    %v706 = vpop.permute.xlu0 %705
    %s708 = scalar_lea.vmem %s177, 8
    %709 = vst.msk [vmem:[%s708] sm:$0x3] %vm358, %v706
    %v710 = vpack.c.bf16 %v702, %v702
    %v712 = vsel %vm242, %v710, 0
    %714 = vmatprep.subr.bf16.mxu0 %v227
    %715 = vmatpush1.bf16.msra.mxu0 %v226
    %716 = vmatprep.subr.bf16.mxu0 %v229
    %717 = vmatpush1.bf16.msra.mxu0 %v228
    %718 = vmatprep.subr.bf16.mxu0 %v231
    %719 = vmatpush1.bf16.msra.mxu0 %v230
    %720 = vmatprep.subr.bf16.mxu0 %v233
    %721 = vmatpush1.bf16.msra.mxu0 %v232
    %722 = vmatprep.subr.bf16.mxu0 0
    %723 = vmatpush1.bf16.msra.mxu0 0
    %724 = vmatprep.subr.bf16.mxu0 0
    %725 = vmatpush1.bf16.msra.mxu0 0
    %726 = vmatprep.subr.bf16.mxu0 0
    %727 = vmatpush1.bf16.msra.mxu0 0
    %728 = vmatprep.subr.bf16.mxu0 0
    %729 = vmatpush1.bf16.msra.mxu0 0
    %730 = vmatprep.subr.bf16.mxu0 0
    %731 = vmatpush1.bf16.msra.mxu0 0
    %732 = vmatprep.subr.bf16.mxu0 0
    %733 = vmatpush1.bf16.msra.mxu0 0
    %734 = vmatprep.subr.bf16.mxu0 0
    %735 = vmatpush1.bf16.msra.mxu0 0
    %736 = vmatprep.subr.bf16.mxu0 0
    %737 = vmatpush1.bf16.msra.mxu0 0
    %738 = vmatprep.subr.bf16.mxu0 0
    %739 = vmatpush1.bf16.msra.mxu0 0
    %740 = vmatprep.subr.bf16.mxu0 0
    %741 = vmatpush1.bf16.msra.mxu0 0
    %742 = vmatprep.subr.bf16.mxu0 0
    %743 = vmatpush1.bf16.msra.mxu0 0
    %744 = vmatprep.subr.bf16.mxu0 0
    %745 = vmatpush1.bf16.msra.mxu0 0
    %746 = vmatprep.mubr.bf16.mxu0 0
    %747 = vmatmul.mubr.bf16.gmra.mrb[0].mxu0 %v712
    %v748 = vpop.f32.mrb[0].mxu0
    %v749 = vadd.f32 0.0, %v748
    %v750 = vpop.f32.mrb[0].mxu0
    %v751 = vadd.f32 0.0, %v750
    %v752 = vpop.f32.mrb[0].mxu0
    %v753 = vpop.f32.mrb[0].mxu0
    %754 = vdwg.mxu0
    %s755 = scalar_lea.vmem [#allocation5], 8
    %v756 = vld [vmem:[%s755] sm:$0x3]
    %v757 = vadd.f32 %v756, %v749
    %s758 = scalar_lea.vmem [#allocation6], 6
    %v759 = vld [vmem:[%s758] sm:$0x3]
    %v760 = vadd.f32 %v759, %v751
    %v761 = vxor.u32 %v757, 2147483648
    %v762 = vmul.f32 %v761, 1.442695
    %v763 = vpow.pop %v762
    %v764 = vadd.f32 %v763, 1.0
    %v765 = vrcp.pop %v764
    %v766 = vmul.f32 1.0, %v765
    %v767 = vtanh.pop %v757
    %v768 = vmul.f32 %v766, %v663
    %770 = vrot.lane.b32.xlu0 %v767, 32
    %v771 = vpop.permute.xlu0 %770
    %v773 = vmul.f32 %v766, %v771
    %775 = vrot.lane.b32.xlu0 %v773, 32
    %v776 = vpop.permute.xlu0 %775
    %v778 = vadd.f32 %v768, %v776
    %v779 = vtanh.pop %v778
    %781 = vrot.lane.b32.xlu0 %v779, 32
    %v782 = vpop.permute.xlu0 %781
    %v784 = vmul.f32 %v766, %v782
    %v785 = vxor.u32 %v760, 2147483648
    %v786 = vmul.f32 %v785, 1.442695
    %v787 = vpow.pop %v786
    %v788 = vadd.f32 %v787, 1.0
    %v789 = vrcp.pop %v788
    %v790 = vmul.f32 1.0, %v789
    %v791 = vtanh.pop %v760
    %v792 = vmul.f32 %v790, %v687
    %794 = vrot.lane.b32.xlu0 %v791, 32
    %v795 = vpop.permute.xlu0 %794
    %v797 = vmul.f32 %v790, %v795
    %799 = vrot.lane.b32.xlu0 %v797, 32
    %v800 = vpop.permute.xlu0 %799
    %v802 = vadd.f32 %v792, %v800
    %v803 = vtanh.pop %v802
    %805 = vrot.lane.b32.xlu0 %v803, 32
    %v806 = vpop.permute.xlu0 %805
    %v808 = vmul.f32 %v790, %v806
    %810 = vrot.lane.b32.xlu0 %v784, 64
    %v811 = vpop.permute.xlu0 %810
    %814 = vrot.lane.b32.xlu0 %v808, 96
    %v815 = vpop.permute.xlu0 %814
    %v817 = vsel %vm356, %v811, %v815
    %s818 = scalar_lea.vmem %s3, 8
    %819 = vst.msk [vmem:[%s818] sm:$0x3] %vm358, %v811
    %820 = vrot.lane.b32.xlu0 %v808, 64
    %v821 = vpop.permute.xlu0 %820
    %s823 = scalar_lea.vmem %s177, 6
    %824 = vst.msk [vmem:[%s823] sm:$0x3] %vm358, %v821
    %v825 = vpack.c.bf16 %v817, %v817
    %v827 = vsel %vm242, %v825, 0
    %829 = vmatprep.subr.bf16.mxu0 %v227
    %830 = vmatpush1.bf16.msra.mxu0 %v226
    %831 = vmatprep.subr.bf16.mxu0 %v229
    %832 = vmatpush1.bf16.msra.mxu0 %v228
    %833 = vmatprep.subr.bf16.mxu0 %v231
    %834 = vmatpush1.bf16.msra.mxu0 %v230
    %835 = vmatprep.subr.bf16.mxu0 %v233
    %836 = vmatpush1.bf16.msra.mxu0 %v232
    %837 = vmatprep.subr.bf16.mxu0 0
    %838 = vmatpush1.bf16.msra.mxu0 0
    %839 = vmatprep.subr.bf16.mxu0 0
    %840 = vmatpush1.bf16.msra.mxu0 0
    %841 = vmatprep.subr.bf16.mxu0 0
    %842 = vmatpush1.bf16.msra.mxu0 0
    %843 = vmatprep.subr.bf16.mxu0 0
    %844 = vmatpush1.bf16.msra.mxu0 0
    %845 = vmatprep.subr.bf16.mxu0 0
    %846 = vmatpush1.bf16.msra.mxu0 0
    %847 = vmatprep.subr.bf16.mxu0 0
    %848 = vmatpush1.bf16.msra.mxu0 0
    %849 = vmatprep.subr.bf16.mxu0 0
    %850 = vmatpush1.bf16.msra.mxu0 0
    %851 = vmatprep.subr.bf16.mxu0 0
    %852 = vmatpush1.bf16.msra.mxu0 0
    %853 = vmatprep.subr.bf16.mxu0 0
    %854 = vmatpush1.bf16.msra.mxu0 0
    %855 = vmatprep.subr.bf16.mxu0 0
    %856 = vmatpush1.bf16.msra.mxu0 0
    %857 = vmatprep.subr.bf16.mxu0 0
    %858 = vmatpush1.bf16.msra.mxu0 0
    %859 = vmatprep.subr.bf16.mxu0 0
    %860 = vmatpush1.bf16.msra.mxu0 0
    %861 = vmatprep.mubr.bf16.mxu0 0
    %862 = vmatmul.mubr.bf16.gmra.mrb[0].mxu0 %v827
    %v863 = vpop.f32.mrb[0].mxu0
    %v864 = vadd.f32 0.0, %v863
    %v865 = vpop.f32.mrb[0].mxu0
    %v866 = vadd.f32 0.0, %v865
    %v867 = vpop.f32.mrb[0].mxu0
    %v868 = vpop.f32.mrb[0].mxu0
    %869 = vdwg.mxu0
    %s870 = scalar_lea.vmem [#allocation5], 10
    %v871 = vld [vmem:[%s870] sm:$0x3]
    %v872 = vadd.f32 %v871, %v864
    %s873 = scalar_lea.vmem [#allocation6], 4
    %v874 = vld [vmem:[%s873] sm:$0x3]
    %v875 = vadd.f32 %v874, %v866
    %v876 = vxor.u32 %v872, 2147483648
    %v877 = vmul.f32 %v876, 1.442695
    %v878 = vpow.pop %v877
    %v879 = vadd.f32 %v878, 1.0
    %v880 = vrcp.pop %v879
    %v881 = vmul.f32 1.0, %v880
    %v882 = vtanh.pop %v872
    %v883 = vmul.f32 %v881, %v778
    %885 = vrot.lane.b32.xlu0 %v882, 32
    %v886 = vpop.permute.xlu0 %885
    %v888 = vmul.f32 %v881, %v886
    %890 = vrot.lane.b32.xlu0 %v888, 32
    %v891 = vpop.permute.xlu0 %890
    %v893 = vadd.f32 %v883, %v891
    %v894 = vtanh.pop %v893
    %896 = vrot.lane.b32.xlu0 %v894, 32
    %v897 = vpop.permute.xlu0 %896
    %v899 = vmul.f32 %v881, %v897
    %v900 = vxor.u32 %v875, 2147483648
    %v901 = vmul.f32 %v900, 1.442695
    %v902 = vpow.pop %v901
    %v903 = vadd.f32 %v902, 1.0
    %v904 = vrcp.pop %v903
    %v905 = vmul.f32 1.0, %v904
    %v906 = vtanh.pop %v875
    %v907 = vmul.f32 %v905, %v802
    %909 = vrot.lane.b32.xlu0 %v906, 32
    %v910 = vpop.permute.xlu0 %909
    %v912 = vmul.f32 %v905, %v910
    %914 = vrot.lane.b32.xlu0 %v912, 32
    %v915 = vpop.permute.xlu0 %914
    %v917 = vadd.f32 %v907, %v915
    %v918 = vtanh.pop %v917
    %920 = vrot.lane.b32.xlu0 %v918, 32
    %v921 = vpop.permute.xlu0 %920
    %v923 = vmul.f32 %v905, %v921
    %925 = vrot.lane.b32.xlu0 %v899, 64
    %v926 = vpop.permute.xlu0 %925
    %929 = vrot.lane.b32.xlu0 %v923, 96
    %v930 = vpop.permute.xlu0 %929
    %v932 = vsel %vm356, %v926, %v930
    %s933 = scalar_lea.vmem %s3, 10
    %934 = vst.msk [vmem:[%s933] sm:$0x3] %vm358, %v926
    %935 = vrot.lane.b32.xlu0 %v923, 64
    %v936 = vpop.permute.xlu0 %935
    %s938 = scalar_lea.vmem %s177, 4
    %939 = vst.msk [vmem:[%s938] sm:$0x3] %vm358, %v936
    %v940 = vpack.c.bf16 %v932, %v932
    %v942 = vsel %vm242, %v940, 0
    %944 = vmatprep.subr.bf16.mxu0 %v227
    %945 = vmatpush1.bf16.msra.mxu0 %v226
    %946 = vmatprep.subr.bf16.mxu0 %v229
    %947 = vmatpush1.bf16.msra.mxu0 %v228
    %948 = vmatprep.subr.bf16.mxu0 %v231
    %949 = vmatpush1.bf16.msra.mxu0 %v230
    %950 = vmatprep.subr.bf16.mxu0 %v233
    %951 = vmatpush1.bf16.msra.mxu0 %v232
    %952 = vmatprep.subr.bf16.mxu0 0
    %953 = vmatpush1.bf16.msra.mxu0 0
    %954 = vmatprep.subr.bf16.mxu0 0
    %955 = vmatpush1.bf16.msra.mxu0 0
    %956 = vmatprep.subr.bf16.mxu0 0
    %957 = vmatpush1.bf16.msra.mxu0 0
    %958 = vmatprep.subr.bf16.mxu0 0
    %959 = vmatpush1.bf16.msra.mxu0 0
    %960 = vmatprep.subr.bf16.mxu0 0
    %961 = vmatpush1.bf16.msra.mxu0 0
    %962 = vmatprep.subr.bf16.mxu0 0
    %963 = vmatpush1.bf16.msra.mxu0 0
    %964 = vmatprep.subr.bf16.mxu0 0
    %965 = vmatpush1.bf16.msra.mxu0 0
    %966 = vmatprep.subr.bf16.mxu0 0
    %967 = vmatpush1.bf16.msra.mxu0 0
    %968 = vmatprep.subr.bf16.mxu0 0
    %969 = vmatpush1.bf16.msra.mxu0 0
    %970 = vmatprep.subr.bf16.mxu0 0
    %971 = vmatpush1.bf16.msra.mxu0 0
    %972 = vmatprep.subr.bf16.mxu0 0
    %973 = vmatpush1.bf16.msra.mxu0 0
    %974 = vmatprep.subr.bf16.mxu0 0
    %975 = vmatpush1.bf16.msra.mxu0 0
    %976 = vmatprep.mubr.bf16.mxu0 0
    %977 = vmatmul.mubr.bf16.gmra.mrb[0].mxu0 %v942
    %v978 = vpop.f32.mrb[0].mxu0
    %v979 = vadd.f32 0.0, %v978
    %v980 = vpop.f32.mrb[0].mxu0
    %v981 = vadd.f32 0.0, %v980
    %v982 = vpop.f32.mrb[0].mxu0
    %v983 = vpop.f32.mrb[0].mxu0
    %984 = vdwg.mxu0
    %s985 = scalar_lea.vmem [#allocation5], 12
    %v986 = vld [vmem:[%s985] sm:$0x3]
    %v987 = vadd.f32 %v986, %v979
    %s988 = scalar_lea.vmem [#allocation6], 2
    %v989 = vld [vmem:[%s988] sm:$0x3]
    %v990 = vadd.f32 %v989, %v981
    %v991 = vxor.u32 %v987, 2147483648
    %v992 = vmul.f32 %v991, 1.442695
    %v993 = vpow.pop %v992
    %v994 = vadd.f32 %v993, 1.0
    %v995 = vrcp.pop %v994
    %v996 = vmul.f32 1.0, %v995
    %v997 = vtanh.pop %v987
    %v998 = vmul.f32 %v996, %v893
    %1000 = vrot.lane.b32.xlu0 %v997, 32
    %v1001 = vpop.permute.xlu0 %1000
    %v1003 = vmul.f32 %v996, %v1001
    %1005 = vrot.lane.b32.xlu0 %v1003, 32
    %v1006 = vpop.permute.xlu0 %1005
    %v1008 = vadd.f32 %v998, %v1006
    %v1009 = vtanh.pop %v1008
    %1011 = vrot.lane.b32.xlu0 %v1009, 32
    %v1012 = vpop.permute.xlu0 %1011
    %v1014 = vmul.f32 %v996, %v1012
    %v1015 = vxor.u32 %v990, 2147483648
    %v1016 = vmul.f32 %v1015, 1.442695
    %v1017 = vpow.pop %v1016
    %v1018 = vadd.f32 %v1017, 1.0
    %v1019 = vrcp.pop %v1018
    %v1020 = vmul.f32 1.0, %v1019
    %v1021 = vtanh.pop %v990
    %v1022 = vmul.f32 %v1020, %v917
    %1024 = vrot.lane.b32.xlu0 %v1021, 32
    %v1025 = vpop.permute.xlu0 %1024
    %v1027 = vmul.f32 %v1020, %v1025
    %1029 = vrot.lane.b32.xlu0 %v1027, 32
    %v1030 = vpop.permute.xlu0 %1029
    %v1032 = vadd.f32 %v1022, %v1030
    %v1033 = vtanh.pop %v1032
    %1035 = vrot.lane.b32.xlu0 %v1033, 32
    %v1036 = vpop.permute.xlu0 %1035
    %v1038 = vmul.f32 %v1020, %v1036
    %1040 = vrot.lane.b32.xlu0 %v1014, 64
    %v1041 = vpop.permute.xlu0 %1040
    %1044 = vrot.lane.b32.xlu0 %v1038, 96
    %v1045 = vpop.permute.xlu0 %1044
    %v1047 = vsel %vm356, %v1041, %v1045
    %s1048 = scalar_lea.vmem %s3, 12
    %1049 = vst.msk [vmem:[%s1048] sm:$0x3] %vm358, %v1041
    %1050 = vrot.lane.b32.xlu0 %v1038, 64
    %v1051 = vpop.permute.xlu0 %1050
    %s1053 = scalar_lea.vmem %s177, 2
    %1054 = vst.msk [vmem:[%s1053] sm:$0x3] %vm358, %v1051
    %v1055 = vpack.c.bf16 %v1047, %v1047
    %v1057 = vsel %vm242, %v1055, 0
    %1059 = vmatprep.subr.bf16.mxu0 %v227
    %1060 = vmatpush1.bf16.msra.mxu0 %v226
    %1061 = vmatprep.subr.bf16.mxu0 %v229
    %1062 = vmatpush1.bf16.msra.mxu0 %v228
    %1063 = vmatprep.subr.bf16.mxu0 %v231
    %1064 = vmatpush1.bf16.msra.mxu0 %v230
    %1065 = vmatprep.subr.bf16.mxu0 %v233
    %1066 = vmatpush1.bf16.msra.mxu0 %v232
    %1067 = vmatprep.subr.bf16.mxu0 0
    %1068 = vmatpush1.bf16.msra.mxu0 0
    %1069 = vmatprep.subr.bf16.mxu0 0
    %1070 = vmatpush1.bf16.msra.mxu0 0
    %1071 = vmatprep.subr.bf16.mxu0 0
    %1072 = vmatpush1.bf16.msra.mxu0 0
    %1073 = vmatprep.subr.bf16.mxu0 0
    %1074 = vmatpush1.bf16.msra.mxu0 0
    %1075 = vmatprep.subr.bf16.mxu0 0
    %1076 = vmatpush1.bf16.msra.mxu0 0
    %1077 = vmatprep.subr.bf16.mxu0 0
    %1078 = vmatpush1.bf16.msra.mxu0 0
    %1079 = vmatprep.subr.bf16.mxu0 0
    %1080 = vmatpush1.bf16.msra.mxu0 0
    %1081 = vmatprep.subr.bf16.mxu0 0
    %1082 = vmatpush1.bf16.msra.mxu0 0
    %1083 = vmatprep.subr.bf16.mxu0 0
    %1084 = vmatpush1.bf16.msra.mxu0 0
    %1085 = vmatprep.subr.bf16.mxu0 0
    %1086 = vmatpush1.bf16.msra.mxu0 0
    %1087 = vmatprep.subr.bf16.mxu0 0
    %1088 = vmatpush1.bf16.msra.mxu0 0
    %1089 = vmatprep.subr.bf16.mxu0 0
    %1090 = vmatpush1.bf16.msra.mxu0 0
    %1091 = vmatprep.mubr.bf16.mxu0 0
    %1092 = vmatmul.mubr.bf16.gmra.mrb[0].mxu0 %v1057
    %v1093 = vpop.f32.mrb[0].mxu0
    %v1094 = vadd.f32 0.0, %v1093
    %v1095 = vpop.f32.mrb[0].mxu0
    %v1096 = vadd.f32 0.0, %v1095
    %v1097 = vpop.f32.mrb[0].mxu0
    %v1098 = vpop.f32.mrb[0].mxu0
    %1099 = vdwg.mxu0
    %s1100 = scalar_lea.vmem [#allocation5], 14
    %v1101 = vld [vmem:[%s1100] sm:$0x3]
    %v1102 = vadd.f32 %v1101, %v1094
    %v1103 = vld [vmem:[#allocation6] sm:$0x3]
    %v1104 = vadd.f32 %v1103, %v1096
    %v1105 = vxor.u32 %v1102, 2147483648
    %v1106 = vmul.f32 %v1105, 1.442695
    %v1107 = vpow.pop %v1106
    %v1108 = vadd.f32 %v1107, 1.0
    %v1109 = vrcp.pop %v1108
    %v1110 = vmul.f32 1.0, %v1109
    %v1111 = vtanh.pop %v1102
    %v1112 = vmul.f32 %v1110, %v1008
    %1114 = vrot.lane.b32.xlu0 %v1111, 32
    %v1115 = vpop.permute.xlu0 %1114
    %v1117 = vmul.f32 %v1110, %v1115
    %1119 = vrot.lane.b32.xlu0 %v1117, 32
    %v1120 = vpop.permute.xlu0 %1119
    %v1122 = vadd.f32 %v1112, %v1120
    %v1123 = vtanh.pop %v1122
    %1125 = vrot.lane.b32.xlu0 %v1123, 32
    %v1126 = vpop.permute.xlu0 %1125
    %v1128 = vmul.f32 %v1110, %v1126
    %v1129 = vxor.u32 %v1104, 2147483648
    %v1130 = vmul.f32 %v1129, 1.442695
    %v1131 = vpow.pop %v1130
    %v1132 = vadd.f32 %v1131, 1.0
    %v1133 = vrcp.pop %v1132
    %v1134 = vmul.f32 1.0, %v1133
    %v1135 = vtanh.pop %v1104
    %v1136 = vmul.f32 %v1134, %v1032
    %1138 = vrot.lane.b32.xlu0 %v1135, 32
    %v1139 = vpop.permute.xlu0 %1138
    %v1141 = vmul.f32 %v1134, %v1139
    %1143 = vrot.lane.b32.xlu0 %v1141, 32
    %v1144 = vpop.permute.xlu0 %1143
    %v1146 = vadd.f32 %v1136, %v1144
    %v1147 = vtanh.pop %v1146
    %1149 = vrot.lane.b32.xlu0 %v1147, 32
    %v1150 = vpop.permute.xlu0 %1149
    %v1152 = vmul.f32 %v1134, %v1150
    %1154 = vrot.lane.b32.xlu0 %v1128, 64
    %v1155 = vpop.permute.xlu0 %1154
    %1158 = vrot.lane.b32.xlu0 %v1152, 96
    %v1159 = vpop.permute.xlu0 %1158
    %v1161 = vsel %vm356, %v1155, %v1159
    %s1162 = scalar_lea.vmem %s3, 14
    %1163 = vst.msk [vmem:[%s1162] sm:$0x3] %vm358, %v1155
    %1164 = vrot.lane.b32.xlu0 %v1152, 64
    %v1165 = vpop.permute.xlu0 %1164
    %1167 = vst.msk [vmem:[%s177] sm:$0x3] %vm358, %v1165
    %vm1168 = vcmask 517120
    %1169 = vst.msk [vmem:[#allocation2] sm:$0x3] %vm1168, %v1161
    %1171 = vrot.lane.b32.xlu0 %v1122, 96
    %v1172 = vpop.permute.xlu0 %1171
    %1174 = vst.msk [vmem:[#allocation3] sm:$0x3] %vm358, %v1172
    %1176 = vrot.lane.b32.xlu0 %v1146, 96
    %v1177 = vpop.permute.xlu0 %1176
    %1179 = vst.msk [vmem:[#allocation4] sm:$0x3] %vm358, %v1177
    // Predicated region
    $region100: #{encoder_forward.3} parent=1 // pred_check
      %p1180 = pneg %p181
    $region101: #{encoder_forward.3} parent=1 // pred_check_branch
      %1182 = sbr.rel (%p1180) target = $region103
    $region102: #{encoder_forward.3} parent=1 // pred_region
      %1183 = vst.msk [vmem:[#allocation7] sm:$0x3] %vm358, %v1155
      %s1184 = scalar_lea.vmem [#allocation7], 2
      %1185 = vst.msk [vmem:[%s1184] sm:$0x3] %vm358, %v1165
      %1186 = vst.msk [vmem:[#allocation9] sm:$0x3] %vm358, %v1172
      %s1187 = scalar_lea.vmem [#allocation9], 2
      %1188 = vst.msk [vmem:[%s1187] sm:$0x3] %vm358, %v1177
    $region103: #{encoder_forward.3} parent=1 // pred_fallthru
      _
    %s1189 = ssub.s32 0, 0
    %s1190 = smul.u32 8, %s1189
    %p1191 = scmp.lt.s32.totalorder %s1190, 7
    %s1192 = scalar_select %p1191, %s1190, 7
    %s1193 = smul.addr %s1192, 2
    %s1194 = scalar_lea.vmem %s4, %s1193
    // Predicated region
    $region104: #{encoder_forward.3} parent=1 // pred_check
      _
    $region105: #{encoder_forward.3} parent=1 // pred_check_branch
      %1196 = sbr.rel (0) target = $region107
    $region106: #{encoder_forward.3} parent=1 // pred_region
      _
    $region107: #{encoder_forward.3} parent=1 // pred_fallthru
      _
    // Predicated region
    $region108: #{encoder_forward.3} parent=1 // pred_check
      _
    $region109: #{encoder_forward.3} parent=1 // pred_check_branch
      %1198 = sbr.rel (0) target = $region111
    $region110: #{encoder_forward.3} parent=1 // pred_region
      %s1199 = ssub.s32 0, 0
      %s1200 = smul.u32 8, %s1199
    $region111: #{encoder_forward.3} parent=1 // pred_fallthru
      _
    // Predicated region
    $region112: #{encoder_forward.3} parent=1 // pred_check
      _
    $region113: #{encoder_forward.3} parent=1 // pred_check_branch
      %1202 = sbr.rel (0) target = $region115
    $region114: #{encoder_forward.3} parent=1 // pred_region
      %s1204 = ssub.s32 64, 64
      %1205 = vsyncadd [#allocation8], %s1204
      %s1206 = sshll.u32 [#allocation7], 4
      %s1207 = int_to_ptr.vmem [resolvable:$true] %s1206
      %1212 = dma.vmem_to_hbm [thread:$0]  %s1207, 64, %s5, [#allocation8], 32, 32, 2
    $region115: #{encoder_forward.3} parent=1 // pred_fallthru
      _
    // Predicated region
    $region116: #{encoder_forward.3} parent=1 // pred_check
      _
    $region117: #{encoder_forward.3} parent=1 // pred_check_branch
      %1214 = sbr.rel (0) target = $region119
    $region118: #{encoder_forward.3} parent=1 // pred_region
      %s1216 = ssub.s32 64, 64
      %1217 = vsyncadd [#allocation10], %s1216
      %s1218 = sshll.u32 [#allocation9], 4
      %s1219 = int_to_ptr.vmem [resolvable:$true] %s1218
      %1224 = dma.vmem_to_hbm [thread:$0]  %s1219, 64, %s6, [#allocation10], 32, 32, 2
    $region119: #{encoder_forward.3} parent=1 // pred_fallthru
      _
    // Predicated region
    $region120: #{encoder_forward.3} parent=1 // pred_check
      _
    $region121: #{encoder_forward.3} parent=1 // pred_check_branch
      %1226 = sbr.rel (0) target = $region123
    $region122: #{encoder_forward.3} parent=1 // pred_region
      _
    $region123: #{encoder_forward.3} parent=1 // pred_fallthru
      _
    // Predicated region
    $region124: #{encoder_forward.3} parent=1 // pred_check
      _
    $region125: #{encoder_forward.3} parent=1 // pred_check_branch
      %1228 = sbr.rel (0) target = $region127
    $region126: #{encoder_forward.3} parent=1 // pred_region
      %s1229 = ssub.s32 0, 0
      %s1230 = smul.u32 8, %s1229
      %p1231 = scmp.lt.s32.totalorder %s1230, 7
      %s1232 = scalar_select %p1231, %s1230, 7
      %s1233 = smul.addr %s1232, 2
      %s1234 = scalar_lea.vmem %s4, %s1233
    $region127: #{encoder_forward.3} parent=1 // pred_fallthru
      _
    // Predicated region
    $region128: #{encoder_forward.3} parent=1 // pred_check
      _
    $region129: #{encoder_forward.3} parent=1 // pred_check_branch
      %1236 = sbr.rel (0) target = $region131
    $region130: #{encoder_forward.3} parent=1 // pred_region
      %1237 = dma.done [#allocation8], 64
    $region131: #{encoder_forward.3} parent=1 // pred_fallthru
      _
    // Predicated region
    $region132: #{encoder_forward.3} parent=1 // pred_check
      _
    $region133: #{encoder_forward.3} parent=1 // pred_check_branch
      %1239 = sbr.rel (0) target = $region135
    $region134: #{encoder_forward.3} parent=1 // pred_region
      %1240 = dma.done [#allocation10], 64
    $region135: #{encoder_forward.3} parent=1 // pred_fallthru
      _
    %1241 = vsyncpa [#allocation8], 1
    %1242 = vsyncpa [#allocation10], 1

</llo_original>
